<compile_context>
chip_gen: v6e
topology: v6e:2x2x1
jax: 0.10.0
libtpu: 0.0.40
codegen_flags: <defaults>
</compile_context>

<pallas_src>
import math

import jax
import jax.numpy as jnp
from jax import lax
from jax.experimental import pallas as pl
from jax.experimental.pallas import tpu as pltpu

# ----------------------- model hyper-parameters (small) -----------------------
NOISY_SIZE = 12
CONDITION_SIZE = 4
D_MODEL = NOISY_SIZE + CONDITION_SIZE      # 16
OUTPUT_SIZE = 8
HIDDEN_SIZE = 32                           # dim_feedforward
NUM_LAYERS = 2
NUM_HEADS = 2
HEAD_DIM = D_MODEL // NUM_HEADS
BATCH = 8                                  # also the transformer "seq" length
LN_EPS = 1e-5
THRESHOLD = 0.6
LOGIT_THRESHOLD = math.log(THRESHOLD / (1.0 - THRESHOLD))   # sigmoid(x)>0.6 <=> x>log(1.5)

LANE_PAD = 128                             # lane width of the parameter slab & output

# ------------------------- parameter-slab row layout --------------------------
PE_ROW = 0                                           # BATCH rows, D lanes
EN_ROW = PE_ROW + BATCH                              # 8   : (12, 16) noisy->x selection
EC_ROW = EN_ROW + NOISY_SIZE                         # 20  : (4, 16)  cond->x selection
LAYER0_ROW = EC_ROW + CONDITION_SIZE                 # 24  (8-aligned)
OFF_INW = 0                                          # (D, 3D)
OFF_OUTW = D_MODEL                                   # (D, D)
OFF_L1W = 2 * D_MODEL                                # (D, H)
OFF_L2W = 3 * D_MODEL                                # (H, D)
OFF_B = 3 * D_MODEL + HIDDEN_SIZE                    # 80: 8 bias rows
LAYER_ROWS = OFF_B + 8                               # 88 (8-aligned)
FC_ROW = LAYER0_ROW + NUM_LAYERS * LAYER_ROWS        # 200: (D, 128) fc weight
FCB_ROW = FC_ROW + D_MODEL                           # 216: (1, 128) fc bias
TOTAL_ROWS = FCB_ROW + 1                             # 217
SLAB_ROWS = 224                                      # padded to a multiple of 8

BIAS_ORDER = ["inb", "outb", "n1w", "n1b", "l1b", "l2b", "n2w", "n2b"]


# --------------------------------- kernel -------------------------------------
def generator_kernel(noisy_ref, cond_ref, p_ref, o_ref):
    # noisy_ref : (S, 12)
    # cond_ref  : (S, 4)
    # p_ref     : (SLAB_ROWS, 128)  single packed parameter slab (see layout above)
    # o_ref     : (S, 128)          lane-dense binary output (first OUTPUT_SIZE lanes valid)
    S = noisy_ref.shape[0]
    D = D_MODEL
    H = HIDDEN_SIZE
    dh = HEAD_DIM
    scale = 1.0 / math.sqrt(dh)

    def layer_norm(v, w, b):
        # mean and mean-of-squares both depend only on v -> independent XLU reduces
        mu = jnp.mean(v, axis=-1, keepdims=True)
        ms = jnp.mean(v * v, axis=-1, keepdims=True)
        var = ms - mu * mu
        return (v - mu) * lax.rsqrt(var + LN_EPS) * w + b

    # --- src = cat(noisy, condition) via exact 0/1 selection matmuls, + PE ----
    e_n = p_ref[EN_ROW:EN_ROW + NOISY_SIZE, 0:D]           # (12, 16)
    e_c = p_ref[EC_ROW:EC_ROW + CONDITION_SIZE, 0:D]       # (4, 16)
    pe = p_ref[PE_ROW:PE_ROW + S, 0:D]                     # (S, 16)
    x = (jnp.dot(noisy_ref[...], e_n, preferred_element_type=jnp.float32)
         + jnp.dot(cond_ref[...], e_c, preferred_element_type=jnp.float32)
         + pe)
    # dropout after positional encoding = identity (eval mode)

    # --- post-norm TransformerEncoderLayer stack (PyTorch defaults, relu FFN) ---
    for l in range(NUM_LAYERS):
        base = LAYER0_ROW + l * LAYER_ROWS
        inw = p_ref[base + OFF_INW:base + OFF_INW + D, 0:3 * D]      # (D, 3D)
        l1w = p_ref[base + OFF_L1W:base + OFF_L1W + D, 0:H]          # (D, H)
        l2w = p_ref[base + OFF_L2W:base + OFF_L2W + H, 0:D]          # (H, D)
        brow = base + OFF_B
        inb = p_ref[brow + 0:brow + 1, 0:3 * D]
        outb = p_ref[brow + 1:brow + 2, 0:D]
        n1w = p_ref[brow + 2:brow + 3, 0:D]
        n1b = p_ref[brow + 3:brow + 4, 0:D]
        l1b = p_ref[brow + 4:brow + 5, 0:H]
        l2b = p_ref[brow + 5:brow + 6, 0:D]
        n2w = p_ref[brow + 6:brow + 7, 0:D]
        n2b = p_ref[brow + 7:brow + 8, 0:D]

        # --- multi-head self-attention (out-proj folded per head, no concat) ---
        qkv = jnp.dot(x, inw, preferred_element_type=jnp.float32) + inb     # (S, 3D)
        attn = outb                                                         # seeds the accumulator
        for h in range(NUM_HEADS):
            qh = qkv[:, h * dh:(h + 1) * dh] * scale                        # (S, dh)
            kh = qkv[:, D + h * dh:D + (h + 1) * dh]                        # (S, dh)
            vh = qkv[:, 2 * D + h * dh:2 * D + (h + 1) * dh]                # (S, dh)
            # q @ k^T without materializing a transpose
            s = lax.dot_general(qh, kh, (((1,), (1,)), ((), ())),
                                preferred_element_type=jnp.float32)         # (S, S)
            s = s - jnp.max(s, axis=-1, keepdims=True)
            p = jnp.exp(s)
            p = p / jnp.sum(p, axis=-1, keepdims=True)                      # exact softmax
            hv = jnp.dot(p, vh, preferred_element_type=jnp.float32)         # (S, dh)
            ow_h = p_ref[base + OFF_OUTW + h * dh:base + OFF_OUTW + (h + 1) * dh, 0:D]
            attn = attn + jnp.dot(hv, ow_h, preferred_element_type=jnp.float32)

        x = layer_norm(x + attn, n1w, n1b)

        # --- feed-forward (relu) ---
        hid = jnp.dot(x, l1w, preferred_element_type=jnp.float32) + l1b
        hid = jnp.maximum(hid, 0.0)
        ffn = jnp.dot(hid, l2w, preferred_element_type=jnp.float32) + l2b

        x = layer_norm(x + ffn, n2w, n2b)

    # --- final projection; sigmoid + (>0.6) collapsed into an exact logit compare ---
    fcw = p_ref[FC_ROW:FC_ROW + D, :]                 # (D, 128) lane-padded
    fcb = p_ref[FCB_ROW:FCB_ROW + 1, :]               # (1, 128)
    logits = jnp.dot(x, fcw, preferred_element_type=jnp.float32) + fcb      # (S, 128)
    o_ref[...] = (logits > LOGIT_THRESHOLD).astype(jnp.float32)


# --------------------------------- glue ---------------------------------------
def make_positional_encoding(max_len, d_model):
    position = jnp.arange(max_len, dtype=jnp.float32)[:, None]
    div_term = jnp.exp(jnp.arange(0, d_model, 2, dtype=jnp.float32)
                       * (-math.log(10000.0) / d_model))
    pe = jnp.zeros((max_len, d_model), dtype=jnp.float32)
    pe = pe.at[:, 0::2].set(jnp.sin(position * div_term))
    pe = pe.at[:, 1::2].set(jnp.cos(position * div_term))
    return pe


def init_raw_params(key):
    """Deterministic synthetic parameters (PyTorch Linear layout (out,in), then
    pre-transposed to (in,out) for the kernel's x @ W convention)."""
    def nrm(k, shape, s=0.05):
        return (s * jax.random.normal(k, shape)).astype(jnp.float32)

    keys = jax.random.split(key, NUM_LAYERS * 12 + 2)
    ki = iter(range(len(keys)))

    raw = {n: [] for n in
           ["inw", "inb", "outw", "outb", "n1w", "n1b",
            "l1w", "l1b", "l2w", "l2b", "n2w", "n2b"]}
    for _ in range(NUM_LAYERS):
        raw["inw"].append(nrm(keys[next(ki)], (3 * D_MODEL, D_MODEL)).T)     # (D, 3D)
        raw["inb"].append(nrm(keys[next(ki)], (1, 3 * D_MODEL)))
        raw["outw"].append(nrm(keys[next(ki)], (D_MODEL, D_MODEL)).T)        # (D, D)
        raw["outb"].append(nrm(keys[next(ki)], (1, D_MODEL)))
        raw["n1w"].append(jnp.ones((1, D_MODEL), jnp.float32)
                          + nrm(keys[next(ki)], (1, D_MODEL)))
        raw["n1b"].append(nrm(keys[next(ki)], (1, D_MODEL)))
        raw["l1w"].append(nrm(keys[next(ki)], (HIDDEN_SIZE, D_MODEL)).T)     # (D, H)
        raw["l1b"].append(nrm(keys[next(ki)], (1, HIDDEN_SIZE)))
        raw["l2w"].append(nrm(keys[next(ki)], (D_MODEL, HIDDEN_SIZE)).T)     # (H, D)
        raw["l2b"].append(nrm(keys[next(ki)], (1, D_MODEL)))
        raw["n2w"].append(jnp.ones((1, D_MODEL), jnp.float32)
                          + nrm(keys[next(ki)], (1, D_MODEL)))
        raw["n2b"].append(nrm(keys[next(ki)], (1, D_MODEL)))

    raw["fcw"] = nrm(keys[next(ki)], (OUTPUT_SIZE, D_MODEL)).T               # (D, O)
    raw["fcb"] = nrm(keys[next(ki)], (1, OUTPUT_SIZE))
    return raw


def pack_params(raw, pe_table):
    """Pack every call-invariant tensor (weights, biases, fc, PE rows, concat
    selection matrices) into ONE lane-dense (SLAB_ROWS, 128) f32 slab."""
    slab = jnp.zeros((SLAB_ROWS, LANE_PAD), jnp.float32)

    def put(s, row, a):
        r, c = a.shape
        return s.at[row:row + r, 0:c].set(a.astype(jnp.float32))

    # exact 0/1 selection matrices implementing cat((noisy, cond), dim=1)
    e_n = jnp.eye(NOISY_SIZE, D_MODEL, dtype=jnp.float32)                    # cols 0..11
    e_c = jnp.eye(CONDITION_SIZE, D_MODEL, k=NOISY_SIZE, dtype=jnp.float32)  # cols 12..15

    slab = put(slab, PE_ROW, pe_table[:BATCH])
    slab = put(slab, EN_ROW, e_n)
    slab = put(slab, EC_ROW, e_c)
    for l in range(NUM_LAYERS):
        base = LAYER0_ROW + l * LAYER_ROWS
        slab = put(slab, base + OFF_INW, raw["inw"][l])
        slab = put(slab, base + OFF_OUTW, raw["outw"][l])
        slab = put(slab, base + OFF_L1W, raw["l1w"][l])
        slab = put(slab, base + OFF_L2W, raw["l2w"][l])
        for i, name in enumerate(BIAS_ORDER):
            slab = put(slab, base + OFF_B + i, raw[name][l])
    slab = put(slab, FC_ROW, raw["fcw"])
    slab = put(slab, FCB_ROW, raw["fcb"])
    return slab


@jax.jit
def generator_sigmoid_forward(noisy, condition_vector, param_slab):
    batch = noisy.shape[0]
    vmem = pl.BlockSpec(memory_space=pltpu.MemorySpace.VMEM)
    out = pl.pallas_call(
        generator_kernel,
        out_shape=jax.ShapeDtypeStruct((batch, LANE_PAD), jnp.float32),
        in_specs=[vmem, vmem, vmem],
        out_specs=vmem,
        cost_estimate=pl.CostEstimate(flops=110_592, transcendentals=288,
                                      bytes_accessed=119_296),
    )(noisy, condition_vector, param_slab)

    # binary_generated_samples.view(batch_size, -1, output_size)
    return out[:, :OUTPUT_SIZE].reshape(batch, -1, OUTPUT_SIZE)


# --------------------------------- main ---------------------------------------
if __name__ == "__main__":
    key = jax.random.PRNGKey(0)
    k_noisy, k_cond, k_params = jax.random.split(key, 3)

    noisy = jax.random.normal(k_noisy, (BATCH, NOISY_SIZE), dtype=jnp.float32)
    condition = jax.random.normal(k_cond, (BATCH, CONDITION_SIZE), dtype=jnp.float32)

    raw_params = init_raw_params(k_params)
    pe_table = make_positional_encoding(max_len=5000, d_model=D_MODEL)
    param_slab = pack_params(raw_params, pe_table)     # packed once, reused every call

    out = generator_sigmoid_forward(noisy, condition, param_slab)
    out = jax.block_until_ready(out)

    assert out.shape == (BATCH, 1, OUTPUT_SIZE), out.shape
    assert out.dtype == jnp.float32
    # output must be binary (0.0 / 1.0)
    assert bool(jnp.all((out == 0.0) | (out == 1.0)))
    print("KERNEL_OK")
</pallas_src>

<mosaic_0001>
module attributes {stable_mosaic.version = 11 : i64} {
  func.func @generator_kernel(%arg0: memref<8x12xf32, #tpu.memory_space<vmem>>, %arg1: memref<8x4xf32, #tpu.memory_space<vmem>>, %arg2: memref<224x128xf32, #tpu.memory_space<vmem>>, %arg3: memref<8x128xf32, #tpu.memory_space<vmem>>) attributes {dimension_semantics = [], scalar_prefetch = 0 : i64, scratch_operands = 0 : i64, tpu.core_type = #tpu.core_type<tc>} {
    %c8 = arith.constant 8 : index
    %c0 = arith.constant 0 : index
    %0 = vector.load %arg2[%c8, %c0] : memref<224x128xf32, #tpu.memory_space<vmem>>, vector<12x16xf32>
    %c20 = arith.constant 20 : index
    %c0_0 = arith.constant 0 : index
    %1 = vector.load %arg2[%c20, %c0_0] : memref<224x128xf32, #tpu.memory_space<vmem>>, vector<4x16xf32>
    %c0_1 = arith.constant 0 : index
    %c0_2 = arith.constant 0 : index
    %2 = vector.load %arg2[%c0_1, %c0_2] : memref<224x128xf32, #tpu.memory_space<vmem>>, vector<8x16xf32>
    %c0_3 = arith.constant 0 : index
    %c0_4 = arith.constant 0 : index
    %3 = vector.load %arg0[%c0_3, %c0_4] : memref<8x12xf32, #tpu.memory_space<vmem>>, vector<8x12xf32>
    %cst = arith.constant dense<0.000000e+00> : vector<8x16xf32>
    %4 = tpu.matmul %3, %0, %cst {dimension_numbers = #tpu.dot_dimension_numbers<[1], [0], [0], [1], [0, 0, 1, 1], [], []>} : vector<8x12xf32>, vector<12x16xf32>, vector<8x16xf32> -> vector<8x16xf32>
    %c0_5 = arith.constant 0 : index
    %c0_6 = arith.constant 0 : index
    %5 = vector.load %arg1[%c0_5, %c0_6] : memref<8x4xf32, #tpu.memory_space<vmem>>, vector<8x4xf32>
    %cst_7 = arith.constant dense<0.000000e+00> : vector<8x16xf32>
    %6 = tpu.matmul %5, %1, %cst_7 {dimension_numbers = #tpu.dot_dimension_numbers<[1], [0], [0], [1], [0, 0, 1, 1], [], []>} : vector<8x4xf32>, vector<4x16xf32>, vector<8x16xf32> -> vector<8x16xf32>
    %7 = arith.addf %4, %6 : vector<8x16xf32>
    %8 = arith.addf %7, %2 : vector<8x16xf32>
    %c24 = arith.constant 24 : index
    %c0_8 = arith.constant 0 : index
    %9 = vector.load %arg2[%c24, %c0_8] : memref<224x128xf32, #tpu.memory_space<vmem>>, vector<16x48xf32>
    %c56 = arith.constant 56 : index
    %c0_9 = arith.constant 0 : index
    %10 = vector.load %arg2[%c56, %c0_9] : memref<224x128xf32, #tpu.memory_space<vmem>>, vector<16x32xf32>
    %c72 = arith.constant 72 : index
    %c0_10 = arith.constant 0 : index
    %11 = vector.load %arg2[%c72, %c0_10] : memref<224x128xf32, #tpu.memory_space<vmem>>, vector<32x16xf32>
    %c104 = arith.constant 104 : index
    %c0_11 = arith.constant 0 : index
    %12 = vector.load %arg2[%c104, %c0_11] : memref<224x128xf32, #tpu.memory_space<vmem>>, vector<1x48xf32>
    %c105 = arith.constant 105 : index
    %c0_12 = arith.constant 0 : index
    %13 = vector.load %arg2[%c105, %c0_12] : memref<224x128xf32, #tpu.memory_space<vmem>>, vector<1x16xf32>
    %c106 = arith.constant 106 : index
    %c0_13 = arith.constant 0 : index
    %14 = vector.load %arg2[%c106, %c0_13] : memref<224x128xf32, #tpu.memory_space<vmem>>, vector<1x16xf32>
    %c107 = arith.constant 107 : index
    %c0_14 = arith.constant 0 : index
    %15 = vector.load %arg2[%c107, %c0_14] : memref<224x128xf32, #tpu.memory_space<vmem>>, vector<1x16xf32>
    %c108 = arith.constant 108 : index
    %c0_15 = arith.constant 0 : index
    %16 = vector.load %arg2[%c108, %c0_15] : memref<224x128xf32, #tpu.memory_space<vmem>>, vector<1x32xf32>
    %c109 = arith.constant 109 : index
    %c0_16 = arith.constant 0 : index
    %17 = vector.load %arg2[%c109, %c0_16] : memref<224x128xf32, #tpu.memory_space<vmem>>, vector<1x16xf32>
    %c110 = arith.constant 110 : index
    %c0_17 = arith.constant 0 : index
    %18 = vector.load %arg2[%c110, %c0_17] : memref<224x128xf32, #tpu.memory_space<vmem>>, vector<1x16xf32>
    %c111 = arith.constant 111 : index
    %c0_18 = arith.constant 0 : index
    %19 = vector.load %arg2[%c111, %c0_18] : memref<224x128xf32, #tpu.memory_space<vmem>>, vector<1x16xf32>
    %cst_19 = arith.constant dense<0.000000e+00> : vector<8x48xf32>
    %20 = tpu.matmul %8, %9, %cst_19 {dimension_numbers = #tpu.dot_dimension_numbers<[1], [0], [0], [1], [0, 0, 1, 1], [], []>} : vector<8x16xf32>, vector<16x48xf32>, vector<8x48xf32> -> vector<8x48xf32>
    %21 = vector.broadcast %12 : vector<1x48xf32> to vector<8x48xf32>
    %22 = arith.addf %20, %21 : vector<8x48xf32>
    %23 = vector.extract_strided_slice %22 {offsets = [0, 0], sizes = [8, 8], strides = [1, 1]} : vector<8x48xf32> to vector<8x8xf32>
    %cst_20 = arith.constant 0.353553385 : f32
    %24 = vector.broadcast %cst_20 : f32 to vector<8x8xf32>
    %25 = arith.mulf %23, %24 : vector<8x8xf32>
    %26 = vector.extract_strided_slice %22 {offsets = [0, 16], sizes = [8, 8], strides = [1, 1]} : vector<8x48xf32> to vector<8x8xf32>
    %27 = vector.extract_strided_slice %22 {offsets = [0, 32], sizes = [8, 8], strides = [1, 1]} : vector<8x48xf32> to vector<8x8xf32>
    %cst_21 = arith.constant dense<0.000000e+00> : vector<8x8xf32>
    %28 = tpu.matmul %25, %26, %cst_21 {dimension_numbers = #tpu.dot_dimension_numbers<[1], [1], [0], [0], [0, 0, 1, 0], [], []>} : vector<8x8xf32>, vector<8x8xf32>, vector<8x8xf32> -> vector<8x8xf32>
    %cst_22 = arith.constant dense<0xFF800000> : vector<8xf32>
    %29 = vector.multi_reduction <maximumf>, %28, %cst_22 [1] : vector<8x8xf32> to vector<8xf32>
    %30 = vector.shape_cast %29 : vector<8xf32> to vector<8x1xf32>
    %31 = vector.broadcast %30 : vector<8x1xf32> to vector<8x8xf32>
    %32 = arith.subf %28, %31 : vector<8x8xf32>
    %33 = math.exp %32 : vector<8x8xf32>
    %cst_23 = arith.constant dense<0.000000e+00> : vector<8xf32>
    %34 = vector.multi_reduction <add>, %33, %cst_23 [1] : vector<8x8xf32> to vector<8xf32>
    %35 = vector.shape_cast %34 : vector<8xf32> to vector<8x1xf32>
    %36 = vector.broadcast %35 : vector<8x1xf32> to vector<8x8xf32>
    %37 = arith.divf %33, %36 : vector<8x8xf32>
    %cst_24 = arith.constant dense<0.000000e+00> : vector<8x8xf32>
    %38 = tpu.matmul %37, %27, %cst_24 {dimension_numbers = #tpu.dot_dimension_numbers<[1], [0], [0], [1], [0, 0, 1, 1], [], []>} : vector<8x8xf32>, vector<8x8xf32>, vector<8x8xf32> -> vector<8x8xf32>
    %c40 = arith.constant 40 : index
    %c0_25 = arith.constant 0 : index
    %39 = vector.load %arg2[%c40, %c0_25] : memref<224x128xf32, #tpu.memory_space<vmem>>, vector<8x16xf32>
    %cst_26 = arith.constant dense<0.000000e+00> : vector<8x16xf32>
    %40 = tpu.matmul %38, %39, %cst_26 {dimension_numbers = #tpu.dot_dimension_numbers<[1], [0], [0], [1], [0, 0, 1, 1], [], []>} : vector<8x8xf32>, vector<8x16xf32>, vector<8x16xf32> -> vector<8x16xf32>
    %41 = vector.broadcast %13 : vector<1x16xf32> to vector<8x16xf32>
    %42 = arith.addf %41, %40 : vector<8x16xf32>
    %43 = vector.extract_strided_slice %22 {offsets = [0, 8], sizes = [8, 8], strides = [1, 1]} : vector<8x48xf32> to vector<8x8xf32>
    %cst_27 = arith.constant 0.353553385 : f32
    %44 = vector.broadcast %cst_27 : f32 to vector<8x8xf32>
    %45 = arith.mulf %43, %44 : vector<8x8xf32>
    %46 = vector.extract_strided_slice %22 {offsets = [0, 24], sizes = [8, 8], strides = [1, 1]} : vector<8x48xf32> to vector<8x8xf32>
    %47 = vector.extract_strided_slice %22 {offsets = [0, 40], sizes = [8, 8], strides = [1, 1]} : vector<8x48xf32> to vector<8x8xf32>
    %cst_28 = arith.constant dense<0.000000e+00> : vector<8x8xf32>
    %48 = tpu.matmul %45, %46, %cst_28 {dimension_numbers = #tpu.dot_dimension_numbers<[1], [1], [0], [0], [0, 0, 1, 0], [], []>} : vector<8x8xf32>, vector<8x8xf32>, vector<8x8xf32> -> vector<8x8xf32>
    %cst_29 = arith.constant dense<0xFF800000> : vector<8xf32>
    %49 = vector.multi_reduction <maximumf>, %48, %cst_29 [1] : vector<8x8xf32> to vector<8xf32>
    %50 = vector.shape_cast %49 : vector<8xf32> to vector<8x1xf32>
    %51 = vector.broadcast %50 : vector<8x1xf32> to vector<8x8xf32>
    %52 = arith.subf %48, %51 : vector<8x8xf32>
    %53 = math.exp %52 : vector<8x8xf32>
    %cst_30 = arith.constant dense<0.000000e+00> : vector<8xf32>
    %54 = vector.multi_reduction <add>, %53, %cst_30 [1] : vector<8x8xf32> to vector<8xf32>
    %55 = vector.shape_cast %54 : vector<8xf32> to vector<8x1xf32>
    %56 = vector.broadcast %55 : vector<8x1xf32> to vector<8x8xf32>
    %57 = arith.divf %53, %56 : vector<8x8xf32>
    %cst_31 = arith.constant dense<0.000000e+00> : vector<8x8xf32>
    %58 = tpu.matmul %57, %47, %cst_31 {dimension_numbers = #tpu.dot_dimension_numbers<[1], [0], [0], [1], [0, 0, 1, 1], [], []>} : vector<8x8xf32>, vector<8x8xf32>, vector<8x8xf32> -> vector<8x8xf32>
    %c48 = arith.constant 48 : index
    %c0_32 = arith.constant 0 : index
    %59 = vector.load %arg2[%c48, %c0_32] : memref<224x128xf32, #tpu.memory_space<vmem>>, vector<8x16xf32>
    %cst_33 = arith.constant dense<0.000000e+00> : vector<8x16xf32>
    %60 = tpu.matmul %58, %59, %cst_33 {dimension_numbers = #tpu.dot_dimension_numbers<[1], [0], [0], [1], [0, 0, 1, 1], [], []>} : vector<8x8xf32>, vector<8x16xf32>, vector<8x16xf32> -> vector<8x16xf32>
    %61 = arith.addf %42, %60 : vector<8x16xf32>
    %62 = arith.addf %8, %61 : vector<8x16xf32>
    %cst_34 = arith.constant dense<0.000000e+00> : vector<8xf32>
    %63 = vector.multi_reduction <add>, %62, %cst_34 [1] : vector<8x16xf32> to vector<8xf32>
    %64 = vector.shape_cast %63 : vector<8xf32> to vector<8x1xf32>
    %cst_35 = arith.constant 1.600000e+01 : f32
    %65 = vector.broadcast %cst_35 : f32 to vector<8x1xf32>
    %66 = arith.divf %64, %65 : vector<8x1xf32>
    %67 = arith.mulf %62, %62 : vector<8x16xf32>
    %cst_36 = arith.constant dense<0.000000e+00> : vector<8xf32>
    %68 = vector.multi_reduction <add>, %67, %cst_36 [1] : vector<8x16xf32> to vector<8xf32>
    %69 = vector.shape_cast %68 : vector<8xf32> to vector<8x1xf32>
    %cst_37 = arith.constant 1.600000e+01 : f32
    %70 = vector.broadcast %cst_37 : f32 to vector<8x1xf32>
    %71 = arith.divf %69, %70 : vector<8x1xf32>
    %72 = arith.mulf %66, %66 : vector<8x1xf32>
    %73 = arith.subf %71, %72 : vector<8x1xf32>
    %74 = vector.broadcast %66 : vector<8x1xf32> to vector<8x16xf32>
    %75 = arith.subf %62, %74 : vector<8x16xf32>
    %cst_38 = arith.constant 9.99999974E-6 : f32
    %76 = vector.broadcast %cst_38 : f32 to vector<8x1xf32>
    %77 = arith.addf %73, %76 : vector<8x1xf32>
    %78 = math.rsqrt %77 : vector<8x1xf32>
    %79 = vector.broadcast %78 : vector<8x1xf32> to vector<8x16xf32>
    %80 = arith.mulf %75, %79 : vector<8x16xf32>
    %81 = vector.broadcast %14 : vector<1x16xf32> to vector<8x16xf32>
    %82 = arith.mulf %80, %81 : vector<8x16xf32>
    %83 = vector.broadcast %15 : vector<1x16xf32> to vector<8x16xf32>
    %84 = arith.addf %82, %83 : vector<8x16xf32>
    %cst_39 = arith.constant dense<0.000000e+00> : vector<8x32xf32>
    %85 = tpu.matmul %84, %10, %cst_39 {dimension_numbers = #tpu.dot_dimension_numbers<[1], [0], [0], [1], [0, 0, 1, 1], [], []>} : vector<8x16xf32>, vector<16x32xf32>, vector<8x32xf32> -> vector<8x32xf32>
    %86 = vector.broadcast %16 : vector<1x32xf32> to vector<8x32xf32>
    %87 = arith.addf %85, %86 : vector<8x32xf32>
    %cst_40 = arith.constant 0.000000e+00 : f32
    %88 = vector.broadcast %cst_40 : f32 to vector<8x32xf32>
    %89 = arith.maximumf %87, %88 : vector<8x32xf32>
    %cst_41 = arith.constant dense<0.000000e+00> : vector<8x16xf32>
    %90 = tpu.matmul %89, %11, %cst_41 {dimension_numbers = #tpu.dot_dimension_numbers<[1], [0], [0], [1], [0, 0, 1, 1], [], []>} : vector<8x32xf32>, vector<32x16xf32>, vector<8x16xf32> -> vector<8x16xf32>
    %91 = vector.broadcast %17 : vector<1x16xf32> to vector<8x16xf32>
    %92 = arith.addf %90, %91 : vector<8x16xf32>
    %93 = arith.addf %84, %92 : vector<8x16xf32>
    %cst_42 = arith.constant dense<0.000000e+00> : vector<8xf32>
    %94 = vector.multi_reduction <add>, %93, %cst_42 [1] : vector<8x16xf32> to vector<8xf32>
    %95 = vector.shape_cast %94 : vector<8xf32> to vector<8x1xf32>
    %cst_43 = arith.constant 1.600000e+01 : f32
    %96 = vector.broadcast %cst_43 : f32 to vector<8x1xf32>
    %97 = arith.divf %95, %96 : vector<8x1xf32>
    %98 = arith.mulf %93, %93 : vector<8x16xf32>
    %cst_44 = arith.constant dense<0.000000e+00> : vector<8xf32>
    %99 = vector.multi_reduction <add>, %98, %cst_44 [1] : vector<8x16xf32> to vector<8xf32>
    %100 = vector.shape_cast %99 : vector<8xf32> to vector<8x1xf32>
    %cst_45 = arith.constant 1.600000e+01 : f32
    %101 = vector.broadcast %cst_45 : f32 to vector<8x1xf32>
    %102 = arith.divf %100, %101 : vector<8x1xf32>
    %103 = arith.mulf %97, %97 : vector<8x1xf32>
    %104 = arith.subf %102, %103 : vector<8x1xf32>
    %105 = vector.broadcast %97 : vector<8x1xf32> to vector<8x16xf32>
    %106 = arith.subf %93, %105 : vector<8x16xf32>
    %cst_46 = arith.constant 9.99999974E-6 : f32
    %107 = vector.broadcast %cst_46 : f32 to vector<8x1xf32>
    %108 = arith.addf %104, %107 : vector<8x1xf32>
    %109 = math.rsqrt %108 : vector<8x1xf32>
    %110 = vector.broadcast %109 : vector<8x1xf32> to vector<8x16xf32>
    %111 = arith.mulf %106, %110 : vector<8x16xf32>
    %112 = vector.broadcast %18 : vector<1x16xf32> to vector<8x16xf32>
    %113 = arith.mulf %111, %112 : vector<8x16xf32>
    %114 = vector.broadcast %19 : vector<1x16xf32> to vector<8x16xf32>
    %115 = arith.addf %113, %114 : vector<8x16xf32>
    %c112 = arith.constant 112 : index
    %c0_47 = arith.constant 0 : index
    %116 = vector.load %arg2[%c112, %c0_47] : memref<224x128xf32, #tpu.memory_space<vmem>>, vector<16x48xf32>
    %c144 = arith.constant 144 : index
    %c0_48 = arith.constant 0 : index
    %117 = vector.load %arg2[%c144, %c0_48] : memref<224x128xf32, #tpu.memory_space<vmem>>, vector<16x32xf32>
    %c160 = arith.constant 160 : index
    %c0_49 = arith.constant 0 : index
    %118 = vector.load %arg2[%c160, %c0_49] : memref<224x128xf32, #tpu.memory_space<vmem>>, vector<32x16xf32>
    %c192 = arith.constant 192 : index
    %c0_50 = arith.constant 0 : index
    %119 = vector.load %arg2[%c192, %c0_50] : memref<224x128xf32, #tpu.memory_space<vmem>>, vector<1x48xf32>
    %c193 = arith.constant 193 : index
    %c0_51 = arith.constant 0 : index
    %120 = vector.load %arg2[%c193, %c0_51] : memref<224x128xf32, #tpu.memory_space<vmem>>, vector<1x16xf32>
    %c194 = arith.constant 194 : index
    %c0_52 = arith.constant 0 : index
    %121 = vector.load %arg2[%c194, %c0_52] : memref<224x128xf32, #tpu.memory_space<vmem>>, vector<1x16xf32>
    %c195 = arith.constant 195 : index
    %c0_53 = arith.constant 0 : index
    %122 = vector.load %arg2[%c195, %c0_53] : memref<224x128xf32, #tpu.memory_space<vmem>>, vector<1x16xf32>
    %c196 = arith.constant 196 : index
    %c0_54 = arith.constant 0 : index
    %123 = vector.load %arg2[%c196, %c0_54] : memref<224x128xf32, #tpu.memory_space<vmem>>, vector<1x32xf32>
    %c197 = arith.constant 197 : index
    %c0_55 = arith.constant 0 : index
    %124 = vector.load %arg2[%c197, %c0_55] : memref<224x128xf32, #tpu.memory_space<vmem>>, vector<1x16xf32>
    %c198 = arith.constant 198 : index
    %c0_56 = arith.constant 0 : index
    %125 = vector.load %arg2[%c198, %c0_56] : memref<224x128xf32, #tpu.memory_space<vmem>>, vector<1x16xf32>
    %c199 = arith.constant 199 : index
    %c0_57 = arith.constant 0 : index
    %126 = vector.load %arg2[%c199, %c0_57] : memref<224x128xf32, #tpu.memory_space<vmem>>, vector<1x16xf32>
    %cst_58 = arith.constant dense<0.000000e+00> : vector<8x48xf32>
    %127 = tpu.matmul %115, %116, %cst_58 {dimension_numbers = #tpu.dot_dimension_numbers<[1], [0], [0], [1], [0, 0, 1, 1], [], []>} : vector<8x16xf32>, vector<16x48xf32>, vector<8x48xf32> -> vector<8x48xf32>
    %128 = vector.broadcast %119 : vector<1x48xf32> to vector<8x48xf32>
    %129 = arith.addf %127, %128 : vector<8x48xf32>
    %130 = vector.extract_strided_slice %129 {offsets = [0, 0], sizes = [8, 8], strides = [1, 1]} : vector<8x48xf32> to vector<8x8xf32>
    %cst_59 = arith.constant 0.353553385 : f32
    %131 = vector.broadcast %cst_59 : f32 to vector<8x8xf32>
    %132 = arith.mulf %130, %131 : vector<8x8xf32>
    %133 = vector.extract_strided_slice %129 {offsets = [0, 16], sizes = [8, 8], strides = [1, 1]} : vector<8x48xf32> to vector<8x8xf32>
    %134 = vector.extract_strided_slice %129 {offsets = [0, 32], sizes = [8, 8], strides = [1, 1]} : vector<8x48xf32> to vector<8x8xf32>
    %cst_60 = arith.constant dense<0.000000e+00> : vector<8x8xf32>
    %135 = tpu.matmul %132, %133, %cst_60 {dimension_numbers = #tpu.dot_dimension_numbers<[1], [1], [0], [0], [0, 0, 1, 0], [], []>} : vector<8x8xf32>, vector<8x8xf32>, vector<8x8xf32> -> vector<8x8xf32>
    %cst_61 = arith.constant dense<0xFF800000> : vector<8xf32>
    %136 = vector.multi_reduction <maximumf>, %135, %cst_61 [1] : vector<8x8xf32> to vector<8xf32>
    %137 = vector.shape_cast %136 : vector<8xf32> to vector<8x1xf32>
    %138 = vector.broadcast %137 : vector<8x1xf32> to vector<8x8xf32>
    %139 = arith.subf %135, %138 : vector<8x8xf32>
    %140 = math.exp %139 : vector<8x8xf32>
    %cst_62 = arith.constant dense<0.000000e+00> : vector<8xf32>
    %141 = vector.multi_reduction <add>, %140, %cst_62 [1] : vector<8x8xf32> to vector<8xf32>
    %142 = vector.shape_cast %141 : vector<8xf32> to vector<8x1xf32>
    %143 = vector.broadcast %142 : vector<8x1xf32> to vector<8x8xf32>
    %144 = arith.divf %140, %143 : vector<8x8xf32>
    %cst_63 = arith.constant dense<0.000000e+00> : vector<8x8xf32>
    %145 = tpu.matmul %144, %134, %cst_63 {dimension_numbers = #tpu.dot_dimension_numbers<[1], [0], [0], [1], [0, 0, 1, 1], [], []>} : vector<8x8xf32>, vector<8x8xf32>, vector<8x8xf32> -> vector<8x8xf32>
    %c128 = arith.constant 128 : index
    %c0_64 = arith.constant 0 : index
    %146 = vector.load %arg2[%c128, %c0_64] : memref<224x128xf32, #tpu.memory_space<vmem>>, vector<8x16xf32>
    %cst_65 = arith.constant dense<0.000000e+00> : vector<8x16xf32>
    %147 = tpu.matmul %145, %146, %cst_65 {dimension_numbers = #tpu.dot_dimension_numbers<[1], [0], [0], [1], [0, 0, 1, 1], [], []>} : vector<8x8xf32>, vector<8x16xf32>, vector<8x16xf32> -> vector<8x16xf32>
    %148 = vector.broadcast %120 : vector<1x16xf32> to vector<8x16xf32>
    %149 = arith.addf %148, %147 : vector<8x16xf32>
    %150 = vector.extract_strided_slice %129 {offsets = [0, 8], sizes = [8, 8], strides = [1, 1]} : vector<8x48xf32> to vector<8x8xf32>
    %cst_66 = arith.constant 0.353553385 : f32
    %151 = vector.broadcast %cst_66 : f32 to vector<8x8xf32>
    %152 = arith.mulf %150, %151 : vector<8x8xf32>
    %153 = vector.extract_strided_slice %129 {offsets = [0, 24], sizes = [8, 8], strides = [1, 1]} : vector<8x48xf32> to vector<8x8xf32>
    %154 = vector.extract_strided_slice %129 {offsets = [0, 40], sizes = [8, 8], strides = [1, 1]} : vector<8x48xf32> to vector<8x8xf32>
    %cst_67 = arith.constant dense<0.000000e+00> : vector<8x8xf32>
    %155 = tpu.matmul %152, %153, %cst_67 {dimension_numbers = #tpu.dot_dimension_numbers<[1], [1], [0], [0], [0, 0, 1, 0], [], []>} : vector<8x8xf32>, vector<8x8xf32>, vector<8x8xf32> -> vector<8x8xf32>
    %cst_68 = arith.constant dense<0xFF800000> : vector<8xf32>
    %156 = vector.multi_reduction <maximumf>, %155, %cst_68 [1] : vector<8x8xf32> to vector<8xf32>
    %157 = vector.shape_cast %156 : vector<8xf32> to vector<8x1xf32>
    %158 = vector.broadcast %157 : vector<8x1xf32> to vector<8x8xf32>
    %159 = arith.subf %155, %158 : vector<8x8xf32>
    %160 = math.exp %159 : vector<8x8xf32>
    %cst_69 = arith.constant dense<0.000000e+00> : vector<8xf32>
    %161 = vector.multi_reduction <add>, %160, %cst_69 [1] : vector<8x8xf32> to vector<8xf32>
    %162 = vector.shape_cast %161 : vector<8xf32> to vector<8x1xf32>
    %163 = vector.broadcast %162 : vector<8x1xf32> to vector<8x8xf32>
    %164 = arith.divf %160, %163 : vector<8x8xf32>
    %cst_70 = arith.constant dense<0.000000e+00> : vector<8x8xf32>
    %165 = tpu.matmul %164, %154, %cst_70 {dimension_numbers = #tpu.dot_dimension_numbers<[1], [0], [0], [1], [0, 0, 1, 1], [], []>} : vector<8x8xf32>, vector<8x8xf32>, vector<8x8xf32> -> vector<8x8xf32>
    %c136 = arith.constant 136 : index
    %c0_71 = arith.constant 0 : index
    %166 = vector.load %arg2[%c136, %c0_71] : memref<224x128xf32, #tpu.memory_space<vmem>>, vector<8x16xf32>
    %cst_72 = arith.constant dense<0.000000e+00> : vector<8x16xf32>
    %167 = tpu.matmul %165, %166, %cst_72 {dimension_numbers = #tpu.dot_dimension_numbers<[1], [0], [0], [1], [0, 0, 1, 1], [], []>} : vector<8x8xf32>, vector<8x16xf32>, vector<8x16xf32> -> vector<8x16xf32>
    %168 = arith.addf %149, %167 : vector<8x16xf32>
    %169 = arith.addf %115, %168 : vector<8x16xf32>
    %cst_73 = arith.constant dense<0.000000e+00> : vector<8xf32>
    %170 = vector.multi_reduction <add>, %169, %cst_73 [1] : vector<8x16xf32> to vector<8xf32>
    %171 = vector.shape_cast %170 : vector<8xf32> to vector<8x1xf32>
    %cst_74 = arith.constant 1.600000e+01 : f32
    %172 = vector.broadcast %cst_74 : f32 to vector<8x1xf32>
    %173 = arith.divf %171, %172 : vector<8x1xf32>
    %174 = arith.mulf %169, %169 : vector<8x16xf32>
    %cst_75 = arith.constant dense<0.000000e+00> : vector<8xf32>
    %175 = vector.multi_reduction <add>, %174, %cst_75 [1] : vector<8x16xf32> to vector<8xf32>
    %176 = vector.shape_cast %175 : vector<8xf32> to vector<8x1xf32>
    %cst_76 = arith.constant 1.600000e+01 : f32
    %177 = vector.broadcast %cst_76 : f32 to vector<8x1xf32>
    %178 = arith.divf %176, %177 : vector<8x1xf32>
    %179 = arith.mulf %173, %173 : vector<8x1xf32>
    %180 = arith.subf %178, %179 : vector<8x1xf32>
    %181 = vector.broadcast %173 : vector<8x1xf32> to vector<8x16xf32>
    %182 = arith.subf %169, %181 : vector<8x16xf32>
    %cst_77 = arith.constant 9.99999974E-6 : f32
    %183 = vector.broadcast %cst_77 : f32 to vector<8x1xf32>
    %184 = arith.addf %180, %183 : vector<8x1xf32>
    %185 = math.rsqrt %184 : vector<8x1xf32>
    %186 = vector.broadcast %185 : vector<8x1xf32> to vector<8x16xf32>
    %187 = arith.mulf %182, %186 : vector<8x16xf32>
    %188 = vector.broadcast %121 : vector<1x16xf32> to vector<8x16xf32>
    %189 = arith.mulf %187, %188 : vector<8x16xf32>
    %190 = vector.broadcast %122 : vector<1x16xf32> to vector<8x16xf32>
    %191 = arith.addf %189, %190 : vector<8x16xf32>
    %cst_78 = arith.constant dense<0.000000e+00> : vector<8x32xf32>
    %192 = tpu.matmul %191, %117, %cst_78 {dimension_numbers = #tpu.dot_dimension_numbers<[1], [0], [0], [1], [0, 0, 1, 1], [], []>} : vector<8x16xf32>, vector<16x32xf32>, vector<8x32xf32> -> vector<8x32xf32>
    %193 = vector.broadcast %123 : vector<1x32xf32> to vector<8x32xf32>
    %194 = arith.addf %192, %193 : vector<8x32xf32>
    %cst_79 = arith.constant 0.000000e+00 : f32
    %195 = vector.broadcast %cst_79 : f32 to vector<8x32xf32>
    %196 = arith.maximumf %194, %195 : vector<8x32xf32>
    %cst_80 = arith.constant dense<0.000000e+00> : vector<8x16xf32>
    %197 = tpu.matmul %196, %118, %cst_80 {dimension_numbers = #tpu.dot_dimension_numbers<[1], [0], [0], [1], [0, 0, 1, 1], [], []>} : vector<8x32xf32>, vector<32x16xf32>, vector<8x16xf32> -> vector<8x16xf32>
    %198 = vector.broadcast %124 : vector<1x16xf32> to vector<8x16xf32>
    %199 = arith.addf %197, %198 : vector<8x16xf32>
    %200 = arith.addf %191, %199 : vector<8x16xf32>
    %cst_81 = arith.constant dense<0.000000e+00> : vector<8xf32>
    %201 = vector.multi_reduction <add>, %200, %cst_81 [1] : vector<8x16xf32> to vector<8xf32>
    %202 = vector.shape_cast %201 : vector<8xf32> to vector<8x1xf32>
    %cst_82 = arith.constant 1.600000e+01 : f32
    %203 = vector.broadcast %cst_82 : f32 to vector<8x1xf32>
    %204 = arith.divf %202, %203 : vector<8x1xf32>
    %205 = arith.mulf %200, %200 : vector<8x16xf32>
    %cst_83 = arith.constant dense<0.000000e+00> : vector<8xf32>
    %206 = vector.multi_reduction <add>, %205, %cst_83 [1] : vector<8x16xf32> to vector<8xf32>
    %207 = vector.shape_cast %206 : vector<8xf32> to vector<8x1xf32>
    %cst_84 = arith.constant 1.600000e+01 : f32
    %208 = vector.broadcast %cst_84 : f32 to vector<8x1xf32>
    %209 = arith.divf %207, %208 : vector<8x1xf32>
    %210 = arith.mulf %204, %204 : vector<8x1xf32>
    %211 = arith.subf %209, %210 : vector<8x1xf32>
    %212 = vector.broadcast %204 : vector<8x1xf32> to vector<8x16xf32>
    %213 = arith.subf %200, %212 : vector<8x16xf32>
    %cst_85 = arith.constant 9.99999974E-6 : f32
    %214 = vector.broadcast %cst_85 : f32 to vector<8x1xf32>
    %215 = arith.addf %211, %214 : vector<8x1xf32>
    %216 = math.rsqrt %215 : vector<8x1xf32>
    %217 = vector.broadcast %216 : vector<8x1xf32> to vector<8x16xf32>
    %218 = arith.mulf %213, %217 : vector<8x16xf32>
    %219 = vector.broadcast %125 : vector<1x16xf32> to vector<8x16xf32>
    %220 = arith.mulf %218, %219 : vector<8x16xf32>
    %221 = vector.broadcast %126 : vector<1x16xf32> to vector<8x16xf32>
    %222 = arith.addf %220, %221 : vector<8x16xf32>
    %c200 = arith.constant 200 : index
    %c0_86 = arith.constant 0 : index
    %223 = vector.load %arg2[%c200, %c0_86] : memref<224x128xf32, #tpu.memory_space<vmem>>, vector<16x128xf32>
    %c216 = arith.constant 216 : index
    %c0_87 = arith.constant 0 : index
    %224 = vector.load %arg2[%c216, %c0_87] : memref<224x128xf32, #tpu.memory_space<vmem>>, vector<1x128xf32>
    %cst_88 = arith.constant dense<0.000000e+00> : vector<8x128xf32>
    %225 = tpu.matmul %222, %223, %cst_88 {dimension_numbers = #tpu.dot_dimension_numbers<[1], [0], [0], [1], [0, 0, 1, 1], [], []>} : vector<8x16xf32>, vector<16x128xf32>, vector<8x128xf32> -> vector<8x128xf32>
    %226 = vector.broadcast %224 : vector<1x128xf32> to vector<8x128xf32>
    %227 = arith.addf %225, %226 : vector<8x128xf32>
    %cst_89 = arith.constant 0.405465096 : f32
    %228 = vector.broadcast %cst_89 : f32 to vector<8x128xf32>
    %229 = arith.cmpf ogt, %227, %228 : vector<8x128xf32>
    %230 = arith.extui %229 : vector<8x128xi1> to vector<8x128xi32>
    %231 = arith.sitofp %230 : vector<8x128xi32> to vector<8x128xf32>
    %c0_90 = arith.constant 0 : index
    %c0_91 = arith.constant 0 : index
    %232 = vector.load %arg3[%c0_90, %c0_91] : memref<8x128xf32, #tpu.memory_space<vmem>>, vector<8x128xf32>
    tpu.vector_store %arg3[%c0_90, %c0_91], %231 {strides = array<i32>} : memref<8x128xf32, #tpu.memory_space<vmem>>, vector<8x128xf32>,
    return
  }
}

</mosaic_0001>

<llo_original>
// kernel: generator_sigmoid_forward.1
$region0: #{generator_sigmoid_forward.1}
  #allocation0 [shape = 'u32[]', space=smem, size = 0x4, offset = 0x4, fixed_abs, tag = 'smem constant byte address 0x4 - core index']
  #allocation1 [shape = 'u32[144,128]{1,0:T(1,128)}', space=vmem, size = 0x12000, scoped, tag = 'internal scratch']
  %s0 = inlined_call_operand.vmem [shape: f32[8,12], index: 0, kind: input, shape index: {}]
  %s1 = inlined_call_operand.vmem [shape: f32[8,4], index: 1, kind: input, shape index: {}]
  %s2 = inlined_call_operand.hbm [shape: f32[224,128], index: 2, kind: input, shape index: {}]
  %s3 = inlined_call_operand.hbm [shape: f32[8,128], index: 3, kind: output, shape index: {}]
  %s4 = sld [smem:[#allocation0]]
  $region26: #{generator_sigmoid_forward.1} parent=0
    _
  %s6 = ssub.s32 1, %s4
  %s7 = scalar_select 0, %s6, %s4
  $region1: #{generator_sigmoid_forward.1} parent=0
    #allocation2 [shape = 'u8[114688]{0}', space=vmem, size = 0x1c000, scoped, tag = 'input window, operand 2, single buffered']
    #allocation3 [shape = 's32[1]{0}', space=sflag, size = 0x4, scoped, tag = 'scoped memory for generator_sigmoid_forward.1']
    #allocation4 [shape = 's32[1]{0}', space=sflag, size = 0x4, scoped, tag = 'scoped memory for generator_sigmoid_forward.1']
    #allocation5 [shape = 'u8[4096]{0}', space=vmem, size = 0x1000, scoped, tag = 'output window, operand 0, single buffered']
    %8 = vsyncpa [#allocation3], 0
    %9 = vsyncpa [#allocation4], 0
    // Predicated region
    $region2: #{generator_sigmoid_forward.1} parent=1 // pred_check
      _
    $region3: #{generator_sigmoid_forward.1} parent=1 // pred_check_branch
      %11 = sbr.rel (0) target = $region5
    $region4: #{generator_sigmoid_forward.1} parent=1 // pred_region
      _
    $region5: #{generator_sigmoid_forward.1} parent=1 // pred_fallthru
      _
    // Predicated region
    $region6: #{generator_sigmoid_forward.1} parent=1 // pred_check
      _
    $region7: #{generator_sigmoid_forward.1} parent=1 // pred_check_branch
      %13 = sbr.rel (0) target = $region9
    $region8: #{generator_sigmoid_forward.1} parent=1 // pred_region
      _
    $region9: #{generator_sigmoid_forward.1} parent=1 // pred_fallthru
      _
    // Predicated region
    $region10: #{generator_sigmoid_forward.1} parent=1 // pred_check
      _
    $region11: #{generator_sigmoid_forward.1} parent=1 // pred_check_branch
      %15 = sbr.rel (0) target = $region13
    $region12: #{generator_sigmoid_forward.1} parent=1 // pred_region
      %s17 = ssub.s32 3584, 3584
      %18 = vsyncadd [#allocation3], %s17
      %s19 = sshll.u32 [#allocation2], 4
      %s20 = int_to_ptr.vmem [resolvable:$true] %s19
      %25 = dma.hbm_to_vmem [thread:$0]  %s2, 3584, %s20, [#allocation3], 128, 128, 8
    $region13: #{generator_sigmoid_forward.1} parent=1 // pred_fallthru
      _
    // Predicated region
    $region14: #{generator_sigmoid_forward.1} parent=1 // pred_check
      _
    $region15: #{generator_sigmoid_forward.1} parent=1 // pred_check_branch
      %27 = sbr.rel (0) target = $region17
    $region16: #{generator_sigmoid_forward.1} parent=1 // pred_region
      %28 = dma.done [#allocation3], 3584
    $region17: #{generator_sigmoid_forward.1} parent=1 // pred_fallthru
      _
    %v29 = vld [vmem:[#allocation2 + $0x8] sm:$0xff]
    %v30 = vld [vmem:[#allocation2 + $0x10] sm:$0xf]
    %v31 = vld [vmem:[#allocation2 + $0x14] sm:$0xf]
    %v32 = vld [vmem:[#allocation2] sm:$0xff]
    %v33 = vld [vmem:[%s0] sm:$0xff]
    %v34 = vld [vmem:[%s1] sm:$0xff]
    %vm35 = vcmask 31744
    %v37 = vsel %vm35, %v34, 0
    %vm39 = vcmask 1043456
    %v41 = vsel %vm39, %v31, 0
    %43 = vmatprep.subr.mxu0 0.0
    %44 = vmatpush1.msra.mxu0 0.0
    %45 = vmatprep.subr.mxu0 0.0
    %46 = vmatpush1.msra.mxu0 0.0
    %47 = vmatprep.subr.mxu0 0.0
    %48 = vmatpush1.msra.mxu0 0.0
    %49 = vmatprep.subr.mxu0 0.0
    %50 = vmatpush1.msra.mxu0 0.0
    %51 = vmatprep.subr.mxu0 0.0
    %52 = vmatpush1.msra.mxu0 0.0
    %53 = vmatprep.subr.mxu0 0.0
    %54 = vmatpush1.msra.mxu0 0.0
    %55 = vmatprep.subr.mxu0 0.0
    %56 = vmatpush1.msra.mxu0 0.0
    %57 = vmatprep.subr.mxu0 0.0
    %58 = vmatpush1.msra.mxu0 0.0
    %59 = vmatprep.subr.mxu0 0.0
    %60 = vmatpush1.msra.mxu0 0.0
    %61 = vmatprep.subr.mxu0 0.0
    %62 = vmatpush1.msra.mxu0 0.0
    %63 = vmatprep.subr.mxu0 0.0
    %64 = vmatpush1.msra.mxu0 0.0
    %65 = vmatprep.subr.mxu0 0.0
    %66 = vmatpush1.msra.mxu0 0.0
    %67 = vmatprep.subr.mxu0 0.0
    %68 = vmatpush1.msra.mxu0 0.0
    %69 = vmatprep.subr.mxu0 0.0
    %70 = vmatpush1.msra.mxu0 0.0
    %71 = vmatprep.subr.mxu0 0.0
    %72 = vmatpush1.msra.mxu0 0.0
    %73 = vmatprep.subr.mxu0 0.0
    %74 = vmatpush1.msra.mxu0 %v41
    %75 = vmatprep.subr.mxu0 0.0
    %76 = vmatpush2.msra.mxu0 0.0
    %77 = vmatprep.subr.mxu0 0.0
    %78 = vmatpush2.msra.mxu0 0.0
    %79 = vmatprep.subr.mxu0 0.0
    %80 = vmatpush2.msra.mxu0 0.0
    %81 = vmatprep.subr.mxu0 0.0
    %82 = vmatpush2.msra.mxu0 0.0
    %83 = vmatprep.subr.mxu0 0.0
    %84 = vmatpush2.msra.mxu0 0.0
    %85 = vmatprep.subr.mxu0 0.0
    %86 = vmatpush2.msra.mxu0 0.0
    %87 = vmatprep.subr.mxu0 0.0
    %88 = vmatpush2.msra.mxu0 0.0
    %89 = vmatprep.subr.mxu0 0.0
    %90 = vmatpush2.msra.mxu0 0.0
    %91 = vmatprep.subr.mxu0 0.0
    %92 = vmatpush2.msra.mxu0 0.0
    %93 = vmatprep.subr.mxu0 0.0
    %94 = vmatpush2.msra.mxu0 0.0
    %95 = vmatprep.subr.mxu0 0.0
    %96 = vmatpush2.msra.mxu0 0.0
    %97 = vmatprep.subr.mxu0 0.0
    %98 = vmatpush2.msra.mxu0 0.0
    %99 = vmatprep.subr.mxu0 0.0
    %100 = vmatpush2.msra.mxu0 0.0
    %101 = vmatprep.subr.mxu0 0.0
    %102 = vmatpush2.msra.mxu0 0.0
    %103 = vmatprep.subr.mxu0 0.0
    %104 = vmatpush2.msra.mxu0 0.0
    %105 = vmatprep.subr.mxu0 0.0
    %106 = vmatpush2.msra.mxu0 0.0
    %107 = vmatprep.mubr.f32.mxu0 0.0
    %108 = vmatmul.mubr.f32.gmra.mxu0 %v37
    %v109 = vpop.f32.mrf.mxu0
    %v110 = vadd.f32 0.0, %v109
    %v111 = vpop.f32.mrf.mxu0
    %112 = vdwg.mxu0
    %vm113 = vcmask 97280
    %v115 = vsel %vm113, %v33, 0
    %v118 = vsel %vm39, %v30, 0
    %120 = vmatprep.subr.mxu0 0.0
    %121 = vmatpush1.msra.mxu0 0.0
    %122 = vmatprep.subr.mxu0 0.0
    %123 = vmatpush1.msra.mxu0 0.0
    %124 = vmatprep.subr.mxu0 0.0
    %125 = vmatpush1.msra.mxu0 0.0
    %126 = vmatprep.subr.mxu0 0.0
    %127 = vmatpush1.msra.mxu0 0.0
    %128 = vmatprep.subr.mxu0 0.0
    %129 = vmatpush1.msra.mxu0 0.0
    %130 = vmatprep.subr.mxu0 0.0
    %131 = vmatpush1.msra.mxu0 0.0
    %132 = vmatprep.subr.mxu0 0.0
    %133 = vmatpush1.msra.mxu0 0.0
    %134 = vmatprep.subr.mxu0 0.0
    %135 = vmatpush1.msra.mxu0 0.0
    %136 = vmatprep.subr.mxu0 0.0
    %137 = vmatpush1.msra.mxu0 0.0
    %138 = vmatprep.subr.mxu0 0.0
    %139 = vmatpush1.msra.mxu0 0.0
    %140 = vmatprep.subr.mxu0 0.0
    %141 = vmatpush1.msra.mxu0 0.0
    %142 = vmatprep.subr.mxu0 0.0
    %143 = vmatpush1.msra.mxu0 0.0
    %144 = vmatprep.subr.mxu0 0.0
    %145 = vmatpush1.msra.mxu0 0.0
    %146 = vmatprep.subr.mxu0 0.0
    %147 = vmatpush1.msra.mxu0 0.0
    %148 = vmatprep.subr.mxu0 0.0
    %149 = vmatpush1.msra.mxu0 %v118
    %150 = vmatprep.subr.mxu0 0.0
    %151 = vmatpush1.msra.mxu0 %v29
    %152 = vmatprep.subr.mxu0 0.0
    %153 = vmatpush2.msra.mxu0 0.0
    %154 = vmatprep.subr.mxu0 0.0
    %155 = vmatpush2.msra.mxu0 0.0
    %156 = vmatprep.subr.mxu0 0.0
    %157 = vmatpush2.msra.mxu0 0.0
    %158 = vmatprep.subr.mxu0 0.0
    %159 = vmatpush2.msra.mxu0 0.0
    %160 = vmatprep.subr.mxu0 0.0
    %161 = vmatpush2.msra.mxu0 0.0
    %162 = vmatprep.subr.mxu0 0.0
    %163 = vmatpush2.msra.mxu0 0.0
    %164 = vmatprep.subr.mxu0 0.0
    %165 = vmatpush2.msra.mxu0 0.0
    %166 = vmatprep.subr.mxu0 0.0
    %167 = vmatpush2.msra.mxu0 0.0
    %168 = vmatprep.subr.mxu0 0.0
    %169 = vmatpush2.msra.mxu0 0.0
    %170 = vmatprep.subr.mxu0 0.0
    %171 = vmatpush2.msra.mxu0 0.0
    %172 = vmatprep.subr.mxu0 0.0
    %173 = vmatpush2.msra.mxu0 0.0
    %174 = vmatprep.subr.mxu0 0.0
    %175 = vmatpush2.msra.mxu0 0.0
    %176 = vmatprep.subr.mxu0 0.0
    %177 = vmatpush2.msra.mxu0 0.0
    %178 = vmatprep.subr.mxu0 0.0
    %179 = vmatpush2.msra.mxu0 0.0
    %180 = vmatprep.subr.mxu0 0.0
    %181 = vmatpush2.msra.mxu0 0.0
    %182 = vmatprep.subr.mxu0 0.0
    %183 = vmatpush2.msra.mxu0 0.0
    %184 = vmatprep.mubr.f32.mxu0 0.0
    %185 = vmatmul.mubr.f32.gmra.mxu0 %v115
    %v186 = vpop.f32.mrf.mxu0
    %v187 = vadd.f32 %v110, %v186
    %v188 = vpop.f32.mrf.mxu0
    %189 = vdwg.mxu0
    %v190 = vadd.f32 %v187, %v32
    %v191 = vld [vmem:[#allocation2 + $0x18] sm:$0xff]
    %v192 = vld [vmem:[#allocation2 + $0x20] sm:$0xff]
    %v193 = vld [vmem:[#allocation2 + $0x38] sm:$0xff]
    %v194 = vld [vmem:[#allocation2 + $0x40] sm:$0xff]
    %v195 = vld [vmem:[#allocation2 + $0x48] sm:$0xff]
    %v196 = vld [vmem:[#allocation2 + $0x50] sm:$0xff]
    %v197 = vld [vmem:[#allocation2 + $0x58] sm:$0xff]
    %v198 = vld [vmem:[#allocation2 + $0x60] sm:$0xff]
    %v199 = vld [vmem:[#allocation2 + $0x68] sm:$0x1]
    %v200 = vld [vmem:[#allocation2 + $0x69] sm:$0x1]
    %v201 = vld [vmem:[#allocation2 + $0x6a] sm:$0x1]
    %v202 = vld [vmem:[#allocation2 + $0x6b] sm:$0x1]
    %v203 = vld [vmem:[#allocation2 + $0x6c] sm:$0x1]
    %v204 = vld [vmem:[#allocation2 + $0x6d] sm:$0x1]
    %v205 = vld [vmem:[#allocation2 + $0x6e] sm:$0x1]
    %v206 = vld [vmem:[#allocation2 + $0x6f] sm:$0x1]
    %v207 = vlaneseq
    %v208 = vshrl.u32 %v207, 7
    %v209 = vsub.s32 0, %v208
    %v210 = vrot.slane %v199, %v209
    %vm211 = vcmask 130048
    %v213 = vsel %vm211, %v190, 0
    %215 = vmatprep.subr.mxu0 0.0
    %216 = vmatpush1.msra.mxu0 0.0
    %217 = vmatprep.subr.mxu0 0.0
    %218 = vmatpush1.msra.mxu0 0.0
    %219 = vmatprep.subr.mxu0 0.0
    %220 = vmatpush1.msra.mxu0 0.0
    %221 = vmatprep.subr.mxu0 0.0
    %222 = vmatpush1.msra.mxu0 0.0
    %223 = vmatprep.subr.mxu0 0.0
    %224 = vmatpush1.msra.mxu0 0.0
    %225 = vmatprep.subr.mxu0 0.0
    %226 = vmatpush1.msra.mxu0 0.0
    %227 = vmatprep.subr.mxu0 0.0
    %228 = vmatpush1.msra.mxu0 0.0
    %229 = vmatprep.subr.mxu0 0.0
    %230 = vmatpush1.msra.mxu0 0.0
    %231 = vmatprep.subr.mxu0 0.0
    %232 = vmatpush1.msra.mxu0 0.0
    %233 = vmatprep.subr.mxu0 0.0
    %234 = vmatpush1.msra.mxu0 0.0
    %235 = vmatprep.subr.mxu0 0.0
    %236 = vmatpush1.msra.mxu0 0.0
    %237 = vmatprep.subr.mxu0 0.0
    %238 = vmatpush1.msra.mxu0 0.0
    %239 = vmatprep.subr.mxu0 0.0
    %240 = vmatpush1.msra.mxu0 0.0
    %241 = vmatprep.subr.mxu0 0.0
    %242 = vmatpush1.msra.mxu0 0.0
    %243 = vmatprep.subr.mxu0 0.0
    %244 = vmatpush1.msra.mxu0 %v192
    %245 = vmatprep.subr.mxu0 0.0
    %246 = vmatpush1.msra.mxu0 %v191
    %247 = vmatprep.subr.mxu0 0.0
    %248 = vmatpush2.msra.mxu0 0.0
    %249 = vmatprep.subr.mxu0 0.0
    %250 = vmatpush2.msra.mxu0 0.0
    %251 = vmatprep.subr.mxu0 0.0
    %252 = vmatpush2.msra.mxu0 0.0
    %253 = vmatprep.subr.mxu0 0.0
    %254 = vmatpush2.msra.mxu0 0.0
    %255 = vmatprep.subr.mxu0 0.0
    %256 = vmatpush2.msra.mxu0 0.0
    %257 = vmatprep.subr.mxu0 0.0
    %258 = vmatpush2.msra.mxu0 0.0
    %259 = vmatprep.subr.mxu0 0.0
    %260 = vmatpush2.msra.mxu0 0.0
    %261 = vmatprep.subr.mxu0 0.0
    %262 = vmatpush2.msra.mxu0 0.0
    %263 = vmatprep.subr.mxu0 0.0
    %264 = vmatpush2.msra.mxu0 0.0
    %265 = vmatprep.subr.mxu0 0.0
    %266 = vmatpush2.msra.mxu0 0.0
    %267 = vmatprep.subr.mxu0 0.0
    %268 = vmatpush2.msra.mxu0 0.0
    %269 = vmatprep.subr.mxu0 0.0
    %270 = vmatpush2.msra.mxu0 0.0
    %271 = vmatprep.subr.mxu0 0.0
    %272 = vmatpush2.msra.mxu0 0.0
    %273 = vmatprep.subr.mxu0 0.0
    %274 = vmatpush2.msra.mxu0 0.0
    %275 = vmatprep.subr.mxu0 0.0
    %276 = vmatpush2.msra.mxu0 0.0
    %277 = vmatprep.subr.mxu0 0.0
    %278 = vmatpush2.msra.mxu0 0.0
    %279 = vmatprep.mubr.f32.mxu0 0.0
    %280 = vmatmul.mubr.f32.gmra.mxu0 %v213
    %v281 = vpop.f32.mrf.mxu0
    %v282 = vadd.f32 %v210, %v281
    %v283 = vpop.f32.mrf.mxu0
    %284 = vdwg.mxu0
    %v285 = vmul.f32 %v282, 0.35355338
    %287 = vrot.lane.b32.xlu0 %v282, 112
    %v288 = vpop.permute.xlu0 %287
    %vm289 = vcmask 64512
    %v291 = vsel %vm289, %v285, 0
    %v293 = vsel %vm289, %v288, 0
    %295 = vmatprep.subr.mxu0 0.0
    %296 = vmatpush1.xpose.msra.mxu0 0.0
    %297 = vmatprep.subr.mxu0 0.0
    %298 = vmatpush1.xpose.msra.mxu0 0.0
    %299 = vmatprep.subr.mxu0 0.0
    %300 = vmatpush1.xpose.msra.mxu0 0.0
    %301 = vmatprep.subr.mxu0 0.0
    %302 = vmatpush1.xpose.msra.mxu0 0.0
    %303 = vmatprep.subr.mxu0 0.0
    %304 = vmatpush1.xpose.msra.mxu0 0.0
    %305 = vmatprep.subr.mxu0 0.0
    %306 = vmatpush1.xpose.msra.mxu0 0.0
    %307 = vmatprep.subr.mxu0 0.0
    %308 = vmatpush1.xpose.msra.mxu0 0.0
    %309 = vmatprep.subr.mxu0 0.0
    %310 = vmatpush1.xpose.msra.mxu0 0.0
    %311 = vmatprep.subr.mxu0 0.0
    %312 = vmatpush1.xpose.msra.mxu0 0.0
    %313 = vmatprep.subr.mxu0 0.0
    %314 = vmatpush1.xpose.msra.mxu0 0.0
    %315 = vmatprep.subr.mxu0 0.0
    %316 = vmatpush1.xpose.msra.mxu0 0.0
    %317 = vmatprep.subr.mxu0 0.0
    %318 = vmatpush1.xpose.msra.mxu0 0.0
    %319 = vmatprep.subr.mxu0 0.0
    %320 = vmatpush1.xpose.msra.mxu0 0.0
    %321 = vmatprep.subr.mxu0 0.0
    %322 = vmatpush1.xpose.msra.mxu0 0.0
    %323 = vmatprep.subr.mxu0 0.0
    %324 = vmatpush1.xpose.msra.mxu0 0.0
    %325 = vmatprep.subr.mxu0 0.0
    %326 = vmatpush1.xpose.msra.mxu0 %v293
    %327 = vmatprep.subr.mxu0 0.0
    %328 = vmatpush2.xpose.msra.mxu0 0.0
    %329 = vmatprep.subr.mxu0 0.0
    %330 = vmatpush2.xpose.msra.mxu0 0.0
    %331 = vmatprep.subr.mxu0 0.0
    %332 = vmatpush2.xpose.msra.mxu0 0.0
    %333 = vmatprep.subr.mxu0 0.0
    %334 = vmatpush2.xpose.msra.mxu0 0.0
    %335 = vmatprep.subr.mxu0 0.0
    %336 = vmatpush2.xpose.msra.mxu0 0.0
    %337 = vmatprep.subr.mxu0 0.0
    %338 = vmatpush2.xpose.msra.mxu0 0.0
    %339 = vmatprep.subr.mxu0 0.0
    %340 = vmatpush2.xpose.msra.mxu0 0.0
    %341 = vmatprep.subr.mxu0 0.0
    %342 = vmatpush2.xpose.msra.mxu0 0.0
    %343 = vmatprep.subr.mxu0 0.0
    %344 = vmatpush2.xpose.msra.mxu0 0.0
    %345 = vmatprep.subr.mxu0 0.0
    %346 = vmatpush2.xpose.msra.mxu0 0.0
    %347 = vmatprep.subr.mxu0 0.0
    %348 = vmatpush2.xpose.msra.mxu0 0.0
    %349 = vmatprep.subr.mxu0 0.0
    %350 = vmatpush2.xpose.msra.mxu0 0.0
    %351 = vmatprep.subr.mxu0 0.0
    %352 = vmatpush2.xpose.msra.mxu0 0.0
    %353 = vmatprep.subr.mxu0 0.0
    %354 = vmatpush2.xpose.msra.mxu0 0.0
    %355 = vmatprep.subr.mxu0 0.0
    %356 = vmatpush2.xpose.msra.mxu0 0.0
    %357 = vmatprep.subr.mxu0 0.0
    %358 = vmatpush2.xpose.msra.mxu0 0.0
    %359 = vmatprep.mubr.f32.mxu0 0.0
    %360 = vmatmul.mubr.f32.gmra.mxu0 %v291
    %v361 = vpop.f32.mrf.mxu0
    %v362 = vadd.f32 0.0, %v361
    %v363 = vpop.f32.mrf.mxu0
    %364 = vdwg.mxu0
    %v365 = vsel %vm289, %v362, -inf
    %366 = vmax.xlane.f32.xlu0 %v365
    %v367 = vpop.xlane.xlu0 %366
    %v368 = vsub.f32 %v362, %v367
    %v369 = vmul.f32 %v368, 1.442695
    %v370 = vpow.pop %v369
    %v371 = vsel %vm289, %v370, 0.0
    %372 = vadd.xlane.f32.xlu0 %v371
    %v373 = vpop.xlane.xlu0 %372
    %v374 = vrcp.pop %v373
    %v375 = vmul.f32 %v370, %v374
    %376 = vrot.lane.b32.xlu0 %v282, 96
    %v377 = vpop.permute.xlu0 %376
    %v380 = vsel %vm289, %v375, 0
    %382 = vmatprep.subr.mxu0 0.0
    %383 = vmatpush1.msra.mxu0 0.0
    %384 = vmatprep.subr.mxu0 0.0
    %385 = vmatpush1.msra.mxu0 0.0
    %386 = vmatprep.subr.mxu0 0.0
    %387 = vmatpush1.msra.mxu0 0.0
    %388 = vmatprep.subr.mxu0 0.0
    %389 = vmatpush1.msra.mxu0 0.0
    %390 = vmatprep.subr.mxu0 0.0
    %391 = vmatpush1.msra.mxu0 0.0
    %392 = vmatprep.subr.mxu0 0.0
    %393 = vmatpush1.msra.mxu0 0.0
    %394 = vmatprep.subr.mxu0 0.0
    %395 = vmatpush1.msra.mxu0 0.0
    %396 = vmatprep.subr.mxu0 0.0
    %397 = vmatpush1.msra.mxu0 0.0
    %398 = vmatprep.subr.mxu0 0.0
    %399 = vmatpush1.msra.mxu0 0.0
    %400 = vmatprep.subr.mxu0 0.0
    %401 = vmatpush1.msra.mxu0 0.0
    %402 = vmatprep.subr.mxu0 0.0
    %403 = vmatpush1.msra.mxu0 0.0
    %404 = vmatprep.subr.mxu0 0.0
    %405 = vmatpush1.msra.mxu0 0.0
    %406 = vmatprep.subr.mxu0 0.0
    %407 = vmatpush1.msra.mxu0 0.0
    %408 = vmatprep.subr.mxu0 0.0
    %409 = vmatpush1.msra.mxu0 0.0
    %410 = vmatprep.subr.mxu0 0.0
    %411 = vmatpush1.msra.mxu0 0.0
    %412 = vmatprep.subr.mxu0 0.0
    %413 = vmatpush1.msra.mxu0 %v377
    %414 = vmatprep.subr.mxu0 0.0
    %415 = vmatpush2.msra.mxu0 0.0
    %416 = vmatprep.subr.mxu0 0.0
    %417 = vmatpush2.msra.mxu0 0.0
    %418 = vmatprep.subr.mxu0 0.0
    %419 = vmatpush2.msra.mxu0 0.0
    %420 = vmatprep.subr.mxu0 0.0
    %421 = vmatpush2.msra.mxu0 0.0
    %422 = vmatprep.subr.mxu0 0.0
    %423 = vmatpush2.msra.mxu0 0.0
    %424 = vmatprep.subr.mxu0 0.0
    %425 = vmatpush2.msra.mxu0 0.0
    %426 = vmatprep.subr.mxu0 0.0
    %427 = vmatpush2.msra.mxu0 0.0
    %428 = vmatprep.subr.mxu0 0.0
    %429 = vmatpush2.msra.mxu0 0.0
    %430 = vmatprep.subr.mxu0 0.0
    %431 = vmatpush2.msra.mxu0 0.0
    %432 = vmatprep.subr.mxu0 0.0
    %433 = vmatpush2.msra.mxu0 0.0
    %434 = vmatprep.subr.mxu0 0.0
    %435 = vmatpush2.msra.mxu0 0.0
    %436 = vmatprep.subr.mxu0 0.0
    %437 = vmatpush2.msra.mxu0 0.0
    %438 = vmatprep.subr.mxu0 0.0
    %439 = vmatpush2.msra.mxu0 0.0
    %440 = vmatprep.subr.mxu0 0.0
    %441 = vmatpush2.msra.mxu0 0.0
    %442 = vmatprep.subr.mxu0 0.0
    %443 = vmatpush2.msra.mxu0 0.0
    %444 = vmatprep.subr.mxu0 0.0
    %445 = vmatpush2.msra.mxu0 0.0
    %446 = vmatprep.mubr.f32.mxu0 0.0
    %447 = vmatmul.mubr.f32.gmra.mxu0 %v380
    %v448 = vpop.f32.mrf.mxu0
    %v449 = vadd.f32 0.0, %v448
    %v450 = vpop.f32.mrf.mxu0
    %451 = vdwg.mxu0
    %v452 = vld [vmem:[#allocation2 + $0x28] sm:$0xff]
    %v454 = vsel %vm289, %v449, 0
    %456 = vmatprep.subr.mxu0 0.0
    %457 = vmatpush1.msra.mxu0 0.0
    %458 = vmatprep.subr.mxu0 0.0
    %459 = vmatpush1.msra.mxu0 0.0
    %460 = vmatprep.subr.mxu0 0.0
    %461 = vmatpush1.msra.mxu0 0.0
    %462 = vmatprep.subr.mxu0 0.0
    %463 = vmatpush1.msra.mxu0 0.0
    %464 = vmatprep.subr.mxu0 0.0
    %465 = vmatpush1.msra.mxu0 0.0
    %466 = vmatprep.subr.mxu0 0.0
    %467 = vmatpush1.msra.mxu0 0.0
    %468 = vmatprep.subr.mxu0 0.0
    %469 = vmatpush1.msra.mxu0 0.0
    %470 = vmatprep.subr.mxu0 0.0
    %471 = vmatpush1.msra.mxu0 0.0
    %472 = vmatprep.subr.mxu0 0.0
    %473 = vmatpush1.msra.mxu0 0.0
    %474 = vmatprep.subr.mxu0 0.0
    %475 = vmatpush1.msra.mxu0 0.0
    %476 = vmatprep.subr.mxu0 0.0
    %477 = vmatpush1.msra.mxu0 0.0
    %478 = vmatprep.subr.mxu0 0.0
    %479 = vmatpush1.msra.mxu0 0.0
    %480 = vmatprep.subr.mxu0 0.0
    %481 = vmatpush1.msra.mxu0 0.0
    %482 = vmatprep.subr.mxu0 0.0
    %483 = vmatpush1.msra.mxu0 0.0
    %484 = vmatprep.subr.mxu0 0.0
    %485 = vmatpush1.msra.mxu0 0.0
    %486 = vmatprep.subr.mxu0 0.0
    %487 = vmatpush1.msra.mxu0 %v452
    %488 = vmatprep.subr.mxu0 0.0
    %489 = vmatpush2.msra.mxu0 0.0
    %490 = vmatprep.subr.mxu0 0.0
    %491 = vmatpush2.msra.mxu0 0.0
    %492 = vmatprep.subr.mxu0 0.0
    %493 = vmatpush2.msra.mxu0 0.0
    %494 = vmatprep.subr.mxu0 0.0
    %495 = vmatpush2.msra.mxu0 0.0
    %496 = vmatprep.subr.mxu0 0.0
    %497 = vmatpush2.msra.mxu0 0.0
    %498 = vmatprep.subr.mxu0 0.0
    %499 = vmatpush2.msra.mxu0 0.0
    %500 = vmatprep.subr.mxu0 0.0
    %501 = vmatpush2.msra.mxu0 0.0
    %502 = vmatprep.subr.mxu0 0.0
    %503 = vmatpush2.msra.mxu0 0.0
    %504 = vmatprep.subr.mxu0 0.0
    %505 = vmatpush2.msra.mxu0 0.0
    %506 = vmatprep.subr.mxu0 0.0
    %507 = vmatpush2.msra.mxu0 0.0
    %508 = vmatprep.subr.mxu0 0.0
    %509 = vmatpush2.msra.mxu0 0.0
    %510 = vmatprep.subr.mxu0 0.0
    %511 = vmatpush2.msra.mxu0 0.0
    %512 = vmatprep.subr.mxu0 0.0
    %513 = vmatpush2.msra.mxu0 0.0
    %514 = vmatprep.subr.mxu0 0.0
    %515 = vmatpush2.msra.mxu0 0.0
    %516 = vmatprep.subr.mxu0 0.0
    %517 = vmatpush2.msra.mxu0 0.0
    %518 = vmatprep.subr.mxu0 0.0
    %519 = vmatpush2.msra.mxu0 0.0
    %520 = vmatprep.mubr.f32.mxu0 0.0
    %521 = vmatmul.mubr.f32.gmra.mxu0 %v454
    %v522 = vpop.f32.mrf.mxu0
    %v523 = vadd.f32 0.0, %v522
    %v524 = vpop.f32.mrf.mxu0
    %525 = vdwg.mxu0
    %v526 = vlaneseq
    %v527 = vshrl.u32 %v526, 7
    %v528 = vsub.s32 0, %v527
    %v529 = vrot.slane %v200, %v528
    %v530 = vadd.f32 %v529, %v523
    %531 = vrot.lane.b32.xlu0 %v285, 120
    %v532 = vpop.permute.xlu0 %531
    %533 = vrot.lane.b32.xlu0 %v282, 104
    %v534 = vpop.permute.xlu0 %533
    %v535 = vsel %vm289, %v532, 0
    %v537 = vsel %vm289, %v534, 0
    %539 = vmatprep.subr.mxu0 0.0
    %540 = vmatpush1.xpose.msra.mxu0 0.0
    %541 = vmatprep.subr.mxu0 0.0
    %542 = vmatpush1.xpose.msra.mxu0 0.0
    %543 = vmatprep.subr.mxu0 0.0
    %544 = vmatpush1.xpose.msra.mxu0 0.0
    %545 = vmatprep.subr.mxu0 0.0
    %546 = vmatpush1.xpose.msra.mxu0 0.0
    %547 = vmatprep.subr.mxu0 0.0
    %548 = vmatpush1.xpose.msra.mxu0 0.0
    %549 = vmatprep.subr.mxu0 0.0
    %550 = vmatpush1.xpose.msra.mxu0 0.0
    %551 = vmatprep.subr.mxu0 0.0
    %552 = vmatpush1.xpose.msra.mxu0 0.0
    %553 = vmatprep.subr.mxu0 0.0
    %554 = vmatpush1.xpose.msra.mxu0 0.0
    %555 = vmatprep.subr.mxu0 0.0
    %556 = vmatpush1.xpose.msra.mxu0 0.0
    %557 = vmatprep.subr.mxu0 0.0
    %558 = vmatpush1.xpose.msra.mxu0 0.0
    %559 = vmatprep.subr.mxu0 0.0
    %560 = vmatpush1.xpose.msra.mxu0 0.0
    %561 = vmatprep.subr.mxu0 0.0
    %562 = vmatpush1.xpose.msra.mxu0 0.0
    %563 = vmatprep.subr.mxu0 0.0
    %564 = vmatpush1.xpose.msra.mxu0 0.0
    %565 = vmatprep.subr.mxu0 0.0
    %566 = vmatpush1.xpose.msra.mxu0 0.0
    %567 = vmatprep.subr.mxu0 0.0
    %568 = vmatpush1.xpose.msra.mxu0 0.0
    %569 = vmatprep.subr.mxu0 0.0
    %570 = vmatpush1.xpose.msra.mxu0 %v537
    %571 = vmatprep.subr.mxu0 0.0
    %572 = vmatpush2.xpose.msra.mxu0 0.0
    %573 = vmatprep.subr.mxu0 0.0
    %574 = vmatpush2.xpose.msra.mxu0 0.0
    %575 = vmatprep.subr.mxu0 0.0
    %576 = vmatpush2.xpose.msra.mxu0 0.0
    %577 = vmatprep.subr.mxu0 0.0
    %578 = vmatpush2.xpose.msra.mxu0 0.0
    %579 = vmatprep.subr.mxu0 0.0
    %580 = vmatpush2.xpose.msra.mxu0 0.0
    %581 = vmatprep.subr.mxu0 0.0
    %582 = vmatpush2.xpose.msra.mxu0 0.0
    %583 = vmatprep.subr.mxu0 0.0
    %584 = vmatpush2.xpose.msra.mxu0 0.0
    %585 = vmatprep.subr.mxu0 0.0
    %586 = vmatpush2.xpose.msra.mxu0 0.0
    %587 = vmatprep.subr.mxu0 0.0
    %588 = vmatpush2.xpose.msra.mxu0 0.0
    %589 = vmatprep.subr.mxu0 0.0
    %590 = vmatpush2.xpose.msra.mxu0 0.0
    %591 = vmatprep.subr.mxu0 0.0
    %592 = vmatpush2.xpose.msra.mxu0 0.0
    %593 = vmatprep.subr.mxu0 0.0
    %594 = vmatpush2.xpose.msra.mxu0 0.0
    %595 = vmatprep.subr.mxu0 0.0
    %596 = vmatpush2.xpose.msra.mxu0 0.0
    %597 = vmatprep.subr.mxu0 0.0
    %598 = vmatpush2.xpose.msra.mxu0 0.0
    %599 = vmatprep.subr.mxu0 0.0
    %600 = vmatpush2.xpose.msra.mxu0 0.0
    %601 = vmatprep.subr.mxu0 0.0
    %602 = vmatpush2.xpose.msra.mxu0 0.0
    %603 = vmatprep.mubr.f32.mxu0 0.0
    %604 = vmatmul.mubr.f32.gmra.mxu0 %v535
    %v605 = vpop.f32.mrf.mxu0
    %v606 = vadd.f32 0.0, %v605
    %v607 = vpop.f32.mrf.mxu0
    %608 = vdwg.mxu0
    %v609 = vsel %vm289, %v606, -inf
    %610 = vmax.xlane.f32.xlu0 %v609
    %v611 = vpop.xlane.xlu0 %610
    %v612 = vsub.f32 %v606, %v611
    %v613 = vmul.f32 %v612, 1.442695
    %v614 = vpow.pop %v613
    %v615 = vsel %vm289, %v614, 0.0
    %616 = vadd.xlane.f32.xlu0 %v615
    %v617 = vpop.xlane.xlu0 %616
    %v618 = vrcp.pop %v617
    %v619 = vmul.f32 %v614, %v618
    %620 = vrot.lane.b32.xlu0 %v282, 88
    %v621 = vpop.permute.xlu0 %620
    %v624 = vsel %vm289, %v619, 0
    %626 = vmatprep.subr.mxu0 0.0
    %627 = vmatpush1.msra.mxu0 0.0
    %628 = vmatprep.subr.mxu0 0.0
    %629 = vmatpush1.msra.mxu0 0.0
    %630 = vmatprep.subr.mxu0 0.0
    %631 = vmatpush1.msra.mxu0 0.0
    %632 = vmatprep.subr.mxu0 0.0
    %633 = vmatpush1.msra.mxu0 0.0
    %634 = vmatprep.subr.mxu0 0.0
    %635 = vmatpush1.msra.mxu0 0.0
    %636 = vmatprep.subr.mxu0 0.0
    %637 = vmatpush1.msra.mxu0 0.0
    %638 = vmatprep.subr.mxu0 0.0
    %639 = vmatpush1.msra.mxu0 0.0
    %640 = vmatprep.subr.mxu0 0.0
    %641 = vmatpush1.msra.mxu0 0.0
    %642 = vmatprep.subr.mxu0 0.0
    %643 = vmatpush1.msra.mxu0 0.0
    %644 = vmatprep.subr.mxu0 0.0
    %645 = vmatpush1.msra.mxu0 0.0
    %646 = vmatprep.subr.mxu0 0.0
    %647 = vmatpush1.msra.mxu0 0.0
    %648 = vmatprep.subr.mxu0 0.0
    %649 = vmatpush1.msra.mxu0 0.0
    %650 = vmatprep.subr.mxu0 0.0
    %651 = vmatpush1.msra.mxu0 0.0
    %652 = vmatprep.subr.mxu0 0.0
    %653 = vmatpush1.msra.mxu0 0.0
    %654 = vmatprep.subr.mxu0 0.0
    %655 = vmatpush1.msra.mxu0 0.0
    %656 = vmatprep.subr.mxu0 0.0
    %657 = vmatpush1.msra.mxu0 %v621
    %658 = vmatprep.subr.mxu0 0.0
    %659 = vmatpush2.msra.mxu0 0.0
    %660 = vmatprep.subr.mxu0 0.0
    %661 = vmatpush2.msra.mxu0 0.0
    %662 = vmatprep.subr.mxu0 0.0
    %663 = vmatpush2.msra.mxu0 0.0
    %664 = vmatprep.subr.mxu0 0.0
    %665 = vmatpush2.msra.mxu0 0.0
    %666 = vmatprep.subr.mxu0 0.0
    %667 = vmatpush2.msra.mxu0 0.0
    %668 = vmatprep.subr.mxu0 0.0
    %669 = vmatpush2.msra.mxu0 0.0
    %670 = vmatprep.subr.mxu0 0.0
    %671 = vmatpush2.msra.mxu0 0.0
    %672 = vmatprep.subr.mxu0 0.0
    %673 = vmatpush2.msra.mxu0 0.0
    %674 = vmatprep.subr.mxu0 0.0
    %675 = vmatpush2.msra.mxu0 0.0
    %676 = vmatprep.subr.mxu0 0.0
    %677 = vmatpush2.msra.mxu0 0.0
    %678 = vmatprep.subr.mxu0 0.0
    %679 = vmatpush2.msra.mxu0 0.0
    %680 = vmatprep.subr.mxu0 0.0
    %681 = vmatpush2.msra.mxu0 0.0
    %682 = vmatprep.subr.mxu0 0.0
    %683 = vmatpush2.msra.mxu0 0.0
    %684 = vmatprep.subr.mxu0 0.0
    %685 = vmatpush2.msra.mxu0 0.0
    %686 = vmatprep.subr.mxu0 0.0
    %687 = vmatpush2.msra.mxu0 0.0
    %688 = vmatprep.subr.mxu0 0.0
    %689 = vmatpush2.msra.mxu0 0.0
    %690 = vmatprep.mubr.f32.mxu0 0.0
    %691 = vmatmul.mubr.f32.gmra.mxu0 %v624
    %v692 = vpop.f32.mrf.mxu0
    %v693 = vadd.f32 0.0, %v692
    %v694 = vpop.f32.mrf.mxu0
    %695 = vdwg.mxu0
    %v696 = vld [vmem:[#allocation2 + $0x30] sm:$0xff]
    %v698 = vsel %vm289, %v693, 0
    %700 = vmatprep.subr.mxu0 0.0
    %701 = vmatpush1.msra.mxu0 0.0
    %702 = vmatprep.subr.mxu0 0.0
    %703 = vmatpush1.msra.mxu0 0.0
    %704 = vmatprep.subr.mxu0 0.0
    %705 = vmatpush1.msra.mxu0 0.0
    %706 = vmatprep.subr.mxu0 0.0
    %707 = vmatpush1.msra.mxu0 0.0
    %708 = vmatprep.subr.mxu0 0.0
    %709 = vmatpush1.msra.mxu0 0.0
    %710 = vmatprep.subr.mxu0 0.0
    %711 = vmatpush1.msra.mxu0 0.0
    %712 = vmatprep.subr.mxu0 0.0
    %713 = vmatpush1.msra.mxu0 0.0
    %714 = vmatprep.subr.mxu0 0.0
    %715 = vmatpush1.msra.mxu0 0.0
    %716 = vmatprep.subr.mxu0 0.0
    %717 = vmatpush1.msra.mxu0 0.0
    %718 = vmatprep.subr.mxu0 0.0
    %719 = vmatpush1.msra.mxu0 0.0
    %720 = vmatprep.subr.mxu0 0.0
    %721 = vmatpush1.msra.mxu0 0.0
    %722 = vmatprep.subr.mxu0 0.0
    %723 = vmatpush1.msra.mxu0 0.0
    %724 = vmatprep.subr.mxu0 0.0
    %725 = vmatpush1.msra.mxu0 0.0
    %726 = vmatprep.subr.mxu0 0.0
    %727 = vmatpush1.msra.mxu0 0.0
    %728 = vmatprep.subr.mxu0 0.0
    %729 = vmatpush1.msra.mxu0 0.0
    %730 = vmatprep.subr.mxu0 0.0
    %731 = vmatpush1.msra.mxu0 %v696
    %732 = vmatprep.subr.mxu0 0.0
    %733 = vmatpush2.msra.mxu0 0.0
    %734 = vmatprep.subr.mxu0 0.0
    %735 = vmatpush2.msra.mxu0 0.0
    %736 = vmatprep.subr.mxu0 0.0
    %737 = vmatpush2.msra.mxu0 0.0
    %738 = vmatprep.subr.mxu0 0.0
    %739 = vmatpush2.msra.mxu0 0.0
    %740 = vmatprep.subr.mxu0 0.0
    %741 = vmatpush2.msra.mxu0 0.0
    %742 = vmatprep.subr.mxu0 0.0
    %743 = vmatpush2.msra.mxu0 0.0
    %744 = vmatprep.subr.mxu0 0.0
    %745 = vmatpush2.msra.mxu0 0.0
    %746 = vmatprep.subr.mxu0 0.0
    %747 = vmatpush2.msra.mxu0 0.0
    %748 = vmatprep.subr.mxu0 0.0
    %749 = vmatpush2.msra.mxu0 0.0
    %750 = vmatprep.subr.mxu0 0.0
    %751 = vmatpush2.msra.mxu0 0.0
    %752 = vmatprep.subr.mxu0 0.0
    %753 = vmatpush2.msra.mxu0 0.0
    %754 = vmatprep.subr.mxu0 0.0
    %755 = vmatpush2.msra.mxu0 0.0
    %756 = vmatprep.subr.mxu0 0.0
    %757 = vmatpush2.msra.mxu0 0.0
    %758 = vmatprep.subr.mxu0 0.0
    %759 = vmatpush2.msra.mxu0 0.0
    %760 = vmatprep.subr.mxu0 0.0
    %761 = vmatpush2.msra.mxu0 0.0
    %762 = vmatprep.subr.mxu0 0.0
    %763 = vmatpush2.msra.mxu0 0.0
    %764 = vmatprep.mubr.f32.mxu0 0.0
    %765 = vmatmul.mubr.f32.gmra.mxu0 %v698
    %v766 = vpop.f32.mrf.mxu0
    %v767 = vadd.f32 0.0, %v766
    %v768 = vpop.f32.mrf.mxu0
    %769 = vdwg.mxu0
    %v770 = vadd.f32 %v530, %v767
    %v771 = vadd.f32 %v190, %v770
    %v772 = vsel %vm211, %v771, 0.0
    %773 = vadd.xlane.f32.xlu0 %v772
    %v774 = vpop.xlane.xlu0 %773
    %v775 = vrcp.pop 16.0
    %v776 = vmul.f32 %v774, %v775
    %v777 = vmul.f32 %v771, %v771
    %v778 = vsel %vm211, %v777, 0.0
    %779 = vadd.xlane.f32.xlu0 %v778
    %v780 = vpop.xlane.xlu0 %779
    %v781 = vmul.f32 %v780, %v775
    %v782 = vmul.f32 %v776, %v776
    %v783 = vsub.f32 %v781, %v782
    %v784 = vsub.f32 %v771, %v776
    %v785 = vadd.f32 %v783, 1e-05
    %v786 = vrsqrt.pop %v785
    %v787 = vmul.f32 %v784, %v786
    %v788 = vlaneseq
    %v789 = vshrl.u32 %v788, 7
    %v790 = vsub.s32 0, %v789
    %v791 = vrot.slane %v201, %v790
    %v792 = vmul.f32 %v787, %v791
    %v793 = vlaneseq
    %v794 = vshrl.u32 %v793, 7
    %v795 = vsub.s32 0, %v794
    %v796 = vrot.slane %v202, %v795
    %v797 = vadd.f32 %v792, %v796
    %v798 = vlaneseq
    %v799 = vshrl.u32 %v798, 7
    %v800 = vsub.s32 0, %v799
    %v801 = vrot.slane %v203, %v800
    %v803 = vsel %vm211, %v797, 0
    %805 = vmatprep.subr.mxu0 0.0
    %806 = vmatpush1.msra.mxu0 0.0
    %807 = vmatprep.subr.mxu0 0.0
    %808 = vmatpush1.msra.mxu0 0.0
    %809 = vmatprep.subr.mxu0 0.0
    %810 = vmatpush1.msra.mxu0 0.0
    %811 = vmatprep.subr.mxu0 0.0
    %812 = vmatpush1.msra.mxu0 0.0
    %813 = vmatprep.subr.mxu0 0.0
    %814 = vmatpush1.msra.mxu0 0.0
    %815 = vmatprep.subr.mxu0 0.0
    %816 = vmatpush1.msra.mxu0 0.0
    %817 = vmatprep.subr.mxu0 0.0
    %818 = vmatpush1.msra.mxu0 0.0
    %819 = vmatprep.subr.mxu0 0.0
    %820 = vmatpush1.msra.mxu0 0.0
    %821 = vmatprep.subr.mxu0 0.0
    %822 = vmatpush1.msra.mxu0 0.0
    %823 = vmatprep.subr.mxu0 0.0
    %824 = vmatpush1.msra.mxu0 0.0
    %825 = vmatprep.subr.mxu0 0.0
    %826 = vmatpush1.msra.mxu0 0.0
    %827 = vmatprep.subr.mxu0 0.0
    %828 = vmatpush1.msra.mxu0 0.0
    %829 = vmatprep.subr.mxu0 0.0
    %830 = vmatpush1.msra.mxu0 0.0
    %831 = vmatprep.subr.mxu0 0.0
    %832 = vmatpush1.msra.mxu0 0.0
    %833 = vmatprep.subr.mxu0 0.0
    %834 = vmatpush1.msra.mxu0 %v194
    %835 = vmatprep.subr.mxu0 0.0
    %836 = vmatpush1.msra.mxu0 %v193
    %837 = vmatprep.subr.mxu0 0.0
    %838 = vmatpush2.msra.mxu0 0.0
    %839 = vmatprep.subr.mxu0 0.0
    %840 = vmatpush2.msra.mxu0 0.0
    %841 = vmatprep.subr.mxu0 0.0
    %842 = vmatpush2.msra.mxu0 0.0
    %843 = vmatprep.subr.mxu0 0.0
    %844 = vmatpush2.msra.mxu0 0.0
    %845 = vmatprep.subr.mxu0 0.0
    %846 = vmatpush2.msra.mxu0 0.0
    %847 = vmatprep.subr.mxu0 0.0
    %848 = vmatpush2.msra.mxu0 0.0
    %849 = vmatprep.subr.mxu0 0.0
    %850 = vmatpush2.msra.mxu0 0.0
    %851 = vmatprep.subr.mxu0 0.0
    %852 = vmatpush2.msra.mxu0 0.0
    %853 = vmatprep.subr.mxu0 0.0
    %854 = vmatpush2.msra.mxu0 0.0
    %855 = vmatprep.subr.mxu0 0.0
    %856 = vmatpush2.msra.mxu0 0.0
    %857 = vmatprep.subr.mxu0 0.0
    %858 = vmatpush2.msra.mxu0 0.0
    %859 = vmatprep.subr.mxu0 0.0
    %860 = vmatpush2.msra.mxu0 0.0
    %861 = vmatprep.subr.mxu0 0.0
    %862 = vmatpush2.msra.mxu0 0.0
    %863 = vmatprep.subr.mxu0 0.0
    %864 = vmatpush2.msra.mxu0 0.0
    %865 = vmatprep.subr.mxu0 0.0
    %866 = vmatpush2.msra.mxu0 0.0
    %867 = vmatprep.subr.mxu0 0.0
    %868 = vmatpush2.msra.mxu0 0.0
    %869 = vmatprep.mubr.f32.mxu0 0.0
    %870 = vmatmul.mubr.f32.gmra.mxu0 %v803
    %v871 = vpop.f32.mrf.mxu0
    %v872 = vadd.f32 %v801, %v871
    %v873 = vpop.f32.mrf.mxu0
    %874 = vdwg.mxu0
    %v875 = vmax.f32 %v872, 0.0
    %v876 = vlaneseq
    %v877 = vshrl.u32 %v876, 7
    %v878 = vsub.s32 0, %v877
    %v879 = vrot.slane %v204, %v878
    %vm880 = vcmask 261120
    %v882 = vsel %vm880, %v875, 0
    %884 = vmatprep.subr.mxu0 0.0
    %885 = vmatpush1.msra.mxu0 0.0
    %886 = vmatprep.subr.mxu0 0.0
    %887 = vmatpush1.msra.mxu0 0.0
    %888 = vmatprep.subr.mxu0 0.0
    %889 = vmatpush1.msra.mxu0 0.0
    %890 = vmatprep.subr.mxu0 0.0
    %891 = vmatpush1.msra.mxu0 0.0
    %892 = vmatprep.subr.mxu0 0.0
    %893 = vmatpush1.msra.mxu0 0.0
    %894 = vmatprep.subr.mxu0 0.0
    %895 = vmatpush1.msra.mxu0 0.0
    %896 = vmatprep.subr.mxu0 0.0
    %897 = vmatpush1.msra.mxu0 0.0
    %898 = vmatprep.subr.mxu0 0.0
    %899 = vmatpush1.msra.mxu0 0.0
    %900 = vmatprep.subr.mxu0 0.0
    %901 = vmatpush1.msra.mxu0 0.0
    %902 = vmatprep.subr.mxu0 0.0
    %903 = vmatpush1.msra.mxu0 0.0
    %904 = vmatprep.subr.mxu0 0.0
    %905 = vmatpush1.msra.mxu0 0.0
    %906 = vmatprep.subr.mxu0 0.0
    %907 = vmatpush1.msra.mxu0 0.0
    %908 = vmatprep.subr.mxu0 0.0
    %909 = vmatpush1.msra.mxu0 %v198
    %910 = vmatprep.subr.mxu0 0.0
    %911 = vmatpush1.msra.mxu0 %v197
    %912 = vmatprep.subr.mxu0 0.0
    %913 = vmatpush1.msra.mxu0 %v196
    %914 = vmatprep.subr.mxu0 0.0
    %915 = vmatpush1.msra.mxu0 %v195
    %916 = vmatprep.subr.mxu0 0.0
    %917 = vmatpush2.msra.mxu0 0.0
    %918 = vmatprep.subr.mxu0 0.0
    %919 = vmatpush2.msra.mxu0 0.0
    %920 = vmatprep.subr.mxu0 0.0
    %921 = vmatpush2.msra.mxu0 0.0
    %922 = vmatprep.subr.mxu0 0.0
    %923 = vmatpush2.msra.mxu0 0.0
    %924 = vmatprep.subr.mxu0 0.0
    %925 = vmatpush2.msra.mxu0 0.0
    %926 = vmatprep.subr.mxu0 0.0
    %927 = vmatpush2.msra.mxu0 0.0
    %928 = vmatprep.subr.mxu0 0.0
    %929 = vmatpush2.msra.mxu0 0.0
    %930 = vmatprep.subr.mxu0 0.0
    %931 = vmatpush2.msra.mxu0 0.0
    %932 = vmatprep.subr.mxu0 0.0
    %933 = vmatpush2.msra.mxu0 0.0
    %934 = vmatprep.subr.mxu0 0.0
    %935 = vmatpush2.msra.mxu0 0.0
    %936 = vmatprep.subr.mxu0 0.0
    %937 = vmatpush2.msra.mxu0 0.0
    %938 = vmatprep.subr.mxu0 0.0
    %939 = vmatpush2.msra.mxu0 0.0
    %940 = vmatprep.subr.mxu0 0.0
    %941 = vmatpush2.msra.mxu0 0.0
    %942 = vmatprep.subr.mxu0 0.0
    %943 = vmatpush2.msra.mxu0 0.0
    %944 = vmatprep.subr.mxu0 0.0
    %945 = vmatpush2.msra.mxu0 0.0
    %946 = vmatprep.subr.mxu0 0.0
    %947 = vmatpush2.msra.mxu0 0.0
    %948 = vmatprep.mubr.f32.mxu0 0.0
    %949 = vmatmul.mubr.f32.gmra.mxu0 %v882
    %v950 = vpop.f32.mrf.mxu0
    %v951 = vadd.f32 %v879, %v950
    %v952 = vpop.f32.mrf.mxu0
    %953 = vdwg.mxu0
    %v954 = vadd.f32 %v797, %v951
    %v955 = vsel %vm211, %v954, 0.0
    %956 = vadd.xlane.f32.xlu0 %v955
    %v957 = vpop.xlane.xlu0 %956
    %v958 = vmul.f32 %v957, %v775
    %v959 = vmul.f32 %v954, %v954
    %v960 = vsel %vm211, %v959, 0.0
    %961 = vadd.xlane.f32.xlu0 %v960
    %v962 = vpop.xlane.xlu0 %961
    %v963 = vmul.f32 %v962, %v775
    %v964 = vmul.f32 %v958, %v958
    %v965 = vsub.f32 %v963, %v964
    %v966 = vsub.f32 %v954, %v958
    %v967 = vadd.f32 %v965, 1e-05
    %v968 = vrsqrt.pop %v967
    %v969 = vmul.f32 %v966, %v968
    %v970 = vlaneseq
    %v971 = vshrl.u32 %v970, 7
    %v972 = vsub.s32 0, %v971
    %v973 = vrot.slane %v205, %v972
    %v974 = vmul.f32 %v969, %v973
    %v975 = vlaneseq
    %v976 = vshrl.u32 %v975, 7
    %v977 = vsub.s32 0, %v976
    %v978 = vrot.slane %v206, %v977
    %v979 = vadd.f32 %v974, %v978
    %v980 = vld [vmem:[#allocation2 + $0x70] sm:$0xff]
    %v981 = vld [vmem:[#allocation2 + $0x78] sm:$0xff]
    %v982 = vld [vmem:[#allocation2 + $0x90] sm:$0xff]
    %v983 = vld [vmem:[#allocation2 + $0x98] sm:$0xff]
    %v984 = vld [vmem:[#allocation2 + $0xa0] sm:$0xff]
    %v985 = vld [vmem:[#allocation2 + $0xa8] sm:$0xff]
    %v986 = vld [vmem:[#allocation2 + $0xb0] sm:$0xff]
    %v987 = vld [vmem:[#allocation2 + $0xb8] sm:$0xff]
    %v988 = vld [vmem:[#allocation2 + $0xc0] sm:$0x1]
    %v989 = vld [vmem:[#allocation2 + $0xc1] sm:$0x1]
    %v990 = vld [vmem:[#allocation2 + $0xc2] sm:$0x1]
    %v991 = vld [vmem:[#allocation2 + $0xc3] sm:$0x1]
    %v992 = vld [vmem:[#allocation2 + $0xc4] sm:$0x1]
    %v993 = vld [vmem:[#allocation2 + $0xc5] sm:$0x1]
    %v994 = vld [vmem:[#allocation2 + $0xc6] sm:$0x1]
    %v995 = vld [vmem:[#allocation2 + $0xc7] sm:$0x1]
    %v996 = vlaneseq
    %v997 = vshrl.u32 %v996, 7
    %v998 = vsub.s32 0, %v997
    %v999 = vrot.slane %v988, %v998
    %v1001 = vsel %vm211, %v979, 0
    %1003 = vmatprep.subr.mxu0 0.0
    %1004 = vmatpush1.msra.mxu0 0.0
    %1005 = vmatprep.subr.mxu0 0.0
    %1006 = vmatpush1.msra.mxu0 0.0
    %1007 = vmatprep.subr.mxu0 0.0
    %1008 = vmatpush1.msra.mxu0 0.0
    %1009 = vmatprep.subr.mxu0 0.0
    %1010 = vmatpush1.msra.mxu0 0.0
    %1011 = vmatprep.subr.mxu0 0.0
    %1012 = vmatpush1.msra.mxu0 0.0
    %1013 = vmatprep.subr.mxu0 0.0
    %1014 = vmatpush1.msra.mxu0 0.0
    %1015 = vmatprep.subr.mxu0 0.0
    %1016 = vmatpush1.msra.mxu0 0.0
    %1017 = vmatprep.subr.mxu0 0.0
    %1018 = vmatpush1.msra.mxu0 0.0
    %1019 = vmatprep.subr.mxu0 0.0
    %1020 = vmatpush1.msra.mxu0 0.0
    %1021 = vmatprep.subr.mxu0 0.0
    %1022 = vmatpush1.msra.mxu0 0.0
    %1023 = vmatprep.subr.mxu0 0.0
    %1024 = vmatpush1.msra.mxu0 0.0
    %1025 = vmatprep.subr.mxu0 0.0
    %1026 = vmatpush1.msra.mxu0 0.0
    %1027 = vmatprep.subr.mxu0 0.0
    %1028 = vmatpush1.msra.mxu0 0.0
    %1029 = vmatprep.subr.mxu0 0.0
    %1030 = vmatpush1.msra.mxu0 0.0
    %1031 = vmatprep.subr.mxu0 0.0
    %1032 = vmatpush1.msra.mxu0 %v981
    %1033 = vmatprep.subr.mxu0 0.0
    %1034 = vmatpush1.msra.mxu0 %v980
    %1035 = vmatprep.subr.mxu0 0.0
    %1036 = vmatpush2.msra.mxu0 0.0
    %1037 = vmatprep.subr.mxu0 0.0
    %1038 = vmatpush2.msra.mxu0 0.0
    %1039 = vmatprep.subr.mxu0 0.0
    %1040 = vmatpush2.msra.mxu0 0.0
    %1041 = vmatprep.subr.mxu0 0.0
    %1042 = vmatpush2.msra.mxu0 0.0
    %1043 = vmatprep.subr.mxu0 0.0
    %1044 = vmatpush2.msra.mxu0 0.0
    %1045 = vmatprep.subr.mxu0 0.0
    %1046 = vmatpush2.msra.mxu0 0.0
    %1047 = vmatprep.subr.mxu0 0.0
    %1048 = vmatpush2.msra.mxu0 0.0
    %1049 = vmatprep.subr.mxu0 0.0
    %1050 = vmatpush2.msra.mxu0 0.0
    %1051 = vmatprep.subr.mxu0 0.0
    %1052 = vmatpush2.msra.mxu0 0.0
    %1053 = vmatprep.subr.mxu0 0.0
    %1054 = vmatpush2.msra.mxu0 0.0
    %1055 = vmatprep.subr.mxu0 0.0
    %1056 = vmatpush2.msra.mxu0 0.0
    %1057 = vmatprep.subr.mxu0 0.0
    %1058 = vmatpush2.msra.mxu0 0.0
    %1059 = vmatprep.subr.mxu0 0.0
    %1060 = vmatpush2.msra.mxu0 0.0
    %1061 = vmatprep.subr.mxu0 0.0
    %1062 = vmatpush2.msra.mxu0 0.0
    %1063 = vmatprep.subr.mxu0 0.0
    %1064 = vmatpush2.msra.mxu0 0.0
    %1065 = vmatprep.subr.mxu0 0.0
    %1066 = vmatpush2.msra.mxu0 0.0
    %1067 = vmatprep.mubr.f32.mxu0 0.0
    %1068 = vmatmul.mubr.f32.gmra.mxu0 %v1001
    %v1069 = vpop.f32.mrf.mxu0
    %v1070 = vadd.f32 %v999, %v1069
    %v1071 = vpop.f32.mrf.mxu0
    %1072 = vdwg.mxu0
    %v1073 = vmul.f32 %v1070, 0.35355338
    %1075 = vrot.lane.b32.xlu0 %v1070, 112
    %v1076 = vpop.permute.xlu0 %1075
    %v1078 = vsel %vm289, %v1073, 0
    %v1080 = vsel %vm289, %v1076, 0
    %1082 = vmatprep.subr.mxu0 0.0
    %1083 = vmatpush1.xpose.msra.mxu0 0.0
    %1084 = vmatprep.subr.mxu0 0.0
    %1085 = vmatpush1.xpose.msra.mxu0 0.0
    %1086 = vmatprep.subr.mxu0 0.0
    %1087 = vmatpush1.xpose.msra.mxu0 0.0
    %1088 = vmatprep.subr.mxu0 0.0
    %1089 = vmatpush1.xpose.msra.mxu0 0.0
    %1090 = vmatprep.subr.mxu0 0.0
    %1091 = vmatpush1.xpose.msra.mxu0 0.0
    %1092 = vmatprep.subr.mxu0 0.0
    %1093 = vmatpush1.xpose.msra.mxu0 0.0
    %1094 = vmatprep.subr.mxu0 0.0
    %1095 = vmatpush1.xpose.msra.mxu0 0.0
    %1096 = vmatprep.subr.mxu0 0.0
    %1097 = vmatpush1.xpose.msra.mxu0 0.0
    %1098 = vmatprep.subr.mxu0 0.0
    %1099 = vmatpush1.xpose.msra.mxu0 0.0
    %1100 = vmatprep.subr.mxu0 0.0
    %1101 = vmatpush1.xpose.msra.mxu0 0.0
    %1102 = vmatprep.subr.mxu0 0.0
    %1103 = vmatpush1.xpose.msra.mxu0 0.0
    %1104 = vmatprep.subr.mxu0 0.0
    %1105 = vmatpush1.xpose.msra.mxu0 0.0
    %1106 = vmatprep.subr.mxu0 0.0
    %1107 = vmatpush1.xpose.msra.mxu0 0.0
    %1108 = vmatprep.subr.mxu0 0.0
    %1109 = vmatpush1.xpose.msra.mxu0 0.0
    %1110 = vmatprep.subr.mxu0 0.0
    %1111 = vmatpush1.xpose.msra.mxu0 0.0
    %1112 = vmatprep.subr.mxu0 0.0
    %1113 = vmatpush1.xpose.msra.mxu0 %v1080
    %1114 = vmatprep.subr.mxu0 0.0
    %1115 = vmatpush2.xpose.msra.mxu0 0.0
    %1116 = vmatprep.subr.mxu0 0.0
    %1117 = vmatpush2.xpose.msra.mxu0 0.0
    %1118 = vmatprep.subr.mxu0 0.0
    %1119 = vmatpush2.xpose.msra.mxu0 0.0
    %1120 = vmatprep.subr.mxu0 0.0
    %1121 = vmatpush2.xpose.msra.mxu0 0.0
    %1122 = vmatprep.subr.mxu0 0.0
    %1123 = vmatpush2.xpose.msra.mxu0 0.0
    %1124 = vmatprep.subr.mxu0 0.0
    %1125 = vmatpush2.xpose.msra.mxu0 0.0
    %1126 = vmatprep.subr.mxu0 0.0
    %1127 = vmatpush2.xpose.msra.mxu0 0.0
    %1128 = vmatprep.subr.mxu0 0.0
    %1129 = vmatpush2.xpose.msra.mxu0 0.0
    %1130 = vmatprep.subr.mxu0 0.0
    %1131 = vmatpush2.xpose.msra.mxu0 0.0
    %1132 = vmatprep.subr.mxu0 0.0
    %1133 = vmatpush2.xpose.msra.mxu0 0.0
    %1134 = vmatprep.subr.mxu0 0.0
    %1135 = vmatpush2.xpose.msra.mxu0 0.0
    %1136 = vmatprep.subr.mxu0 0.0
    %1137 = vmatpush2.xpose.msra.mxu0 0.0
    %1138 = vmatprep.subr.mxu0 0.0
    %1139 = vmatpush2.xpose.msra.mxu0 0.0
    %1140 = vmatprep.subr.mxu0 0.0
    %1141 = vmatpush2.xpose.msra.mxu0 0.0
    %1142 = vmatprep.subr.mxu0 0.0
    %1143 = vmatpush2.xpose.msra.mxu0 0.0
    %1144 = vmatprep.subr.mxu0 0.0
    %1145 = vmatpush2.xpose.msra.mxu0 0.0
    %1146 = vmatprep.mubr.f32.mxu0 0.0
    %1147 = vmatmul.mubr.f32.gmra.mxu0 %v1078
    %v1148 = vpop.f32.mrf.mxu0
    %v1149 = vadd.f32 0.0, %v1148
    %v1150 = vpop.f32.mrf.mxu0
    %1151 = vdwg.mxu0
    %v1152 = vsel %vm289, %v1149, -inf
    %1153 = vmax.xlane.f32.xlu0 %v1152
    %v1154 = vpop.xlane.xlu0 %1153
    %v1155 = vsub.f32 %v1149, %v1154
    %v1156 = vmul.f32 %v1155, 1.442695
    %v1157 = vpow.pop %v1156
    %v1158 = vsel %vm289, %v1157, 0.0
    %1159 = vadd.xlane.f32.xlu0 %v1158
    %v1160 = vpop.xlane.xlu0 %1159
    %v1161 = vrcp.pop %v1160
    %v1162 = vmul.f32 %v1157, %v1161
    %1163 = vrot.lane.b32.xlu0 %v1070, 96
    %v1164 = vpop.permute.xlu0 %1163
    %v1167 = vsel %vm289, %v1162, 0
    %1169 = vmatprep.subr.mxu0 0.0
    %1170 = vmatpush1.msra.mxu0 0.0
    %1171 = vmatprep.subr.mxu0 0.0
    %1172 = vmatpush1.msra.mxu0 0.0
    %1173 = vmatprep.subr.mxu0 0.0
    %1174 = vmatpush1.msra.mxu0 0.0
    %1175 = vmatprep.subr.mxu0 0.0
    %1176 = vmatpush1.msra.mxu0 0.0
    %1177 = vmatprep.subr.mxu0 0.0
    %1178 = vmatpush1.msra.mxu0 0.0
    %1179 = vmatprep.subr.mxu0 0.0
    %1180 = vmatpush1.msra.mxu0 0.0
    %1181 = vmatprep.subr.mxu0 0.0
    %1182 = vmatpush1.msra.mxu0 0.0
    %1183 = vmatprep.subr.mxu0 0.0
    %1184 = vmatpush1.msra.mxu0 0.0
    %1185 = vmatprep.subr.mxu0 0.0
    %1186 = vmatpush1.msra.mxu0 0.0
    %1187 = vmatprep.subr.mxu0 0.0
    %1188 = vmatpush1.msra.mxu0 0.0
    %1189 = vmatprep.subr.mxu0 0.0
    %1190 = vmatpush1.msra.mxu0 0.0
    %1191 = vmatprep.subr.mxu0 0.0
    %1192 = vmatpush1.msra.mxu0 0.0
    %1193 = vmatprep.subr.mxu0 0.0
    %1194 = vmatpush1.msra.mxu0 0.0
    %1195 = vmatprep.subr.mxu0 0.0
    %1196 = vmatpush1.msra.mxu0 0.0
    %1197 = vmatprep.subr.mxu0 0.0
    %1198 = vmatpush1.msra.mxu0 0.0
    %1199 = vmatprep.subr.mxu0 0.0
    %1200 = vmatpush1.msra.mxu0 %v1164
    %1201 = vmatprep.subr.mxu0 0.0
    %1202 = vmatpush2.msra.mxu0 0.0
    %1203 = vmatprep.subr.mxu0 0.0
    %1204 = vmatpush2.msra.mxu0 0.0
    %1205 = vmatprep.subr.mxu0 0.0
    %1206 = vmatpush2.msra.mxu0 0.0
    %1207 = vmatprep.subr.mxu0 0.0
    %1208 = vmatpush2.msra.mxu0 0.0
    %1209 = vmatprep.subr.mxu0 0.0
    %1210 = vmatpush2.msra.mxu0 0.0
    %1211 = vmatprep.subr.mxu0 0.0
    %1212 = vmatpush2.msra.mxu0 0.0
    %1213 = vmatprep.subr.mxu0 0.0
    %1214 = vmatpush2.msra.mxu0 0.0
    %1215 = vmatprep.subr.mxu0 0.0
    %1216 = vmatpush2.msra.mxu0 0.0
    %1217 = vmatprep.subr.mxu0 0.0
    %1218 = vmatpush2.msra.mxu0 0.0
    %1219 = vmatprep.subr.mxu0 0.0
    %1220 = vmatpush2.msra.mxu0 0.0
    %1221 = vmatprep.subr.mxu0 0.0
    %1222 = vmatpush2.msra.mxu0 0.0
    %1223 = vmatprep.subr.mxu0 0.0
    %1224 = vmatpush2.msra.mxu0 0.0
    %1225 = vmatprep.subr.mxu0 0.0
    %1226 = vmatpush2.msra.mxu0 0.0
    %1227 = vmatprep.subr.mxu0 0.0
    %1228 = vmatpush2.msra.mxu0 0.0
    %1229 = vmatprep.subr.mxu0 0.0
    %1230 = vmatpush2.msra.mxu0 0.0
    %1231 = vmatprep.subr.mxu0 0.0
    %1232 = vmatpush2.msra.mxu0 0.0
    %1233 = vmatprep.mubr.f32.mxu0 0.0
    %1234 = vmatmul.mubr.f32.gmra.mxu0 %v1167
    %v1235 = vpop.f32.mrf.mxu0
    %v1236 = vadd.f32 0.0, %v1235
    %v1237 = vpop.f32.mrf.mxu0
    %1238 = vdwg.mxu0
    %v1239 = vld [vmem:[#allocation2 + $0x80] sm:$0xff]
    %v1241 = vsel %vm289, %v1236, 0
    %1243 = vmatprep.subr.mxu0 0.0
    %1244 = vmatpush1.msra.mxu0 0.0
    %1245 = vmatprep.subr.mxu0 0.0
    %1246 = vmatpush1.msra.mxu0 0.0
    %1247 = vmatprep.subr.mxu0 0.0
    %1248 = vmatpush1.msra.mxu0 0.0
    %1249 = vmatprep.subr.mxu0 0.0
    %1250 = vmatpush1.msra.mxu0 0.0
    %1251 = vmatprep.subr.mxu0 0.0
    %1252 = vmatpush1.msra.mxu0 0.0
    %1253 = vmatprep.subr.mxu0 0.0
    %1254 = vmatpush1.msra.mxu0 0.0
    %1255 = vmatprep.subr.mxu0 0.0
    %1256 = vmatpush1.msra.mxu0 0.0
    %1257 = vmatprep.subr.mxu0 0.0
    %1258 = vmatpush1.msra.mxu0 0.0
    %1259 = vmatprep.subr.mxu0 0.0
    %1260 = vmatpush1.msra.mxu0 0.0
    %1261 = vmatprep.subr.mxu0 0.0
    %1262 = vmatpush1.msra.mxu0 0.0
    %1263 = vmatprep.subr.mxu0 0.0
    %1264 = vmatpush1.msra.mxu0 0.0
    %1265 = vmatprep.subr.mxu0 0.0
    %1266 = vmatpush1.msra.mxu0 0.0
    %1267 = vmatprep.subr.mxu0 0.0
    %1268 = vmatpush1.msra.mxu0 0.0
    %1269 = vmatprep.subr.mxu0 0.0
    %1270 = vmatpush1.msra.mxu0 0.0
    %1271 = vmatprep.subr.mxu0 0.0
    %1272 = vmatpush1.msra.mxu0 0.0
    %1273 = vmatprep.subr.mxu0 0.0
    %1274 = vmatpush1.msra.mxu0 %v1239
    %1275 = vmatprep.subr.mxu0 0.0
    %1276 = vmatpush2.msra.mxu0 0.0
    %1277 = vmatprep.subr.mxu0 0.0
    %1278 = vmatpush2.msra.mxu0 0.0
    %1279 = vmatprep.subr.mxu0 0.0
    %1280 = vmatpush2.msra.mxu0 0.0
    %1281 = vmatprep.subr.mxu0 0.0
    %1282 = vmatpush2.msra.mxu0 0.0
    %1283 = vmatprep.subr.mxu0 0.0
    %1284 = vmatpush2.msra.mxu0 0.0
    %1285 = vmatprep.subr.mxu0 0.0
    %1286 = vmatpush2.msra.mxu0 0.0
    %1287 = vmatprep.subr.mxu0 0.0
    %1288 = vmatpush2.msra.mxu0 0.0
    %1289 = vmatprep.subr.mxu0 0.0
    %1290 = vmatpush2.msra.mxu0 0.0
    %1291 = vmatprep.subr.mxu0 0.0
    %1292 = vmatpush2.msra.mxu0 0.0
    %1293 = vmatprep.subr.mxu0 0.0
    %1294 = vmatpush2.msra.mxu0 0.0
    %1295 = vmatprep.subr.mxu0 0.0
    %1296 = vmatpush2.msra.mxu0 0.0
    %1297 = vmatprep.subr.mxu0 0.0
    %1298 = vmatpush2.msra.mxu0 0.0
    %1299 = vmatprep.subr.mxu0 0.0
    %1300 = vmatpush2.msra.mxu0 0.0
    %1301 = vmatprep.subr.mxu0 0.0
    %1302 = vmatpush2.msra.mxu0 0.0
    %1303 = vmatprep.subr.mxu0 0.0
    %1304 = vmatpush2.msra.mxu0 0.0
    %1305 = vmatprep.subr.mxu0 0.0
    %1306 = vmatpush2.msra.mxu0 0.0
    %1307 = vmatprep.mubr.f32.mxu0 0.0
    %1308 = vmatmul.mubr.f32.gmra.mxu0 %v1241
    %v1309 = vpop.f32.mrf.mxu0
    %v1310 = vadd.f32 0.0, %v1309
    %v1311 = vpop.f32.mrf.mxu0
    %1312 = vdwg.mxu0
    %v1313 = vlaneseq
    %v1314 = vshrl.u32 %v1313, 7
    %v1315 = vsub.s32 0, %v1314
    %v1316 = vrot.slane %v989, %v1315
    %v1317 = vadd.f32 %v1316, %v1310
    %1318 = vrot.lane.b32.xlu0 %v1073, 120
    %v1319 = vpop.permute.xlu0 %1318
    %1320 = vrot.lane.b32.xlu0 %v1070, 104
    %v1321 = vpop.permute.xlu0 %1320
    %v1322 = vsel %vm289, %v1319, 0
    %v1324 = vsel %vm289, %v1321, 0
    %1326 = vmatprep.subr.mxu0 0.0
    %1327 = vmatpush1.xpose.msra.mxu0 0.0
    %1328 = vmatprep.subr.mxu0 0.0
    %1329 = vmatpush1.xpose.msra.mxu0 0.0
    %1330 = vmatprep.subr.mxu0 0.0
    %1331 = vmatpush1.xpose.msra.mxu0 0.0
    %1332 = vmatprep.subr.mxu0 0.0
    %1333 = vmatpush1.xpose.msra.mxu0 0.0
    %1334 = vmatprep.subr.mxu0 0.0
    %1335 = vmatpush1.xpose.msra.mxu0 0.0
    %1336 = vmatprep.subr.mxu0 0.0
    %1337 = vmatpush1.xpose.msra.mxu0 0.0
    %1338 = vmatprep.subr.mxu0 0.0
    %1339 = vmatpush1.xpose.msra.mxu0 0.0
    %1340 = vmatprep.subr.mxu0 0.0
    %1341 = vmatpush1.xpose.msra.mxu0 0.0
    %1342 = vmatprep.subr.mxu0 0.0
    %1343 = vmatpush1.xpose.msra.mxu0 0.0
    %1344 = vmatprep.subr.mxu0 0.0
    %1345 = vmatpush1.xpose.msra.mxu0 0.0
    %1346 = vmatprep.subr.mxu0 0.0
    %1347 = vmatpush1.xpose.msra.mxu0 0.0
    %1348 = vmatprep.subr.mxu0 0.0
    %1349 = vmatpush1.xpose.msra.mxu0 0.0
    %1350 = vmatprep.subr.mxu0 0.0
    %1351 = vmatpush1.xpose.msra.mxu0 0.0
    %1352 = vmatprep.subr.mxu0 0.0
    %1353 = vmatpush1.xpose.msra.mxu0 0.0
    %1354 = vmatprep.subr.mxu0 0.0
    %1355 = vmatpush1.xpose.msra.mxu0 0.0
    %1356 = vmatprep.subr.mxu0 0.0
    %1357 = vmatpush1.xpose.msra.mxu0 %v1324
    %1358 = vmatprep.subr.mxu0 0.0
    %1359 = vmatpush2.xpose.msra.mxu0 0.0
    %1360 = vmatprep.subr.mxu0 0.0
    %1361 = vmatpush2.xpose.msra.mxu0 0.0
    %1362 = vmatprep.subr.mxu0 0.0
    %1363 = vmatpush2.xpose.msra.mxu0 0.0
    %1364 = vmatprep.subr.mxu0 0.0
    %1365 = vmatpush2.xpose.msra.mxu0 0.0
    %1366 = vmatprep.subr.mxu0 0.0
    %1367 = vmatpush2.xpose.msra.mxu0 0.0
    %1368 = vmatprep.subr.mxu0 0.0
    %1369 = vmatpush2.xpose.msra.mxu0 0.0
    %1370 = vmatprep.subr.mxu0 0.0
    %1371 = vmatpush2.xpose.msra.mxu0 0.0
    %1372 = vmatprep.subr.mxu0 0.0
    %1373 = vmatpush2.xpose.msra.mxu0 0.0
    %1374 = vmatprep.subr.mxu0 0.0
    %1375 = vmatpush2.xpose.msra.mxu0 0.0
    %1376 = vmatprep.subr.mxu0 0.0
    %1377 = vmatpush2.xpose.msra.mxu0 0.0
    %1378 = vmatprep.subr.mxu0 0.0
    %1379 = vmatpush2.xpose.msra.mxu0 0.0
    %1380 = vmatprep.subr.mxu0 0.0
    %1381 = vmatpush2.xpose.msra.mxu0 0.0
    %1382 = vmatprep.subr.mxu0 0.0
    %1383 = vmatpush2.xpose.msra.mxu0 0.0
    %1384 = vmatprep.subr.mxu0 0.0
    %1385 = vmatpush2.xpose.msra.mxu0 0.0
    %1386 = vmatprep.subr.mxu0 0.0
    %1387 = vmatpush2.xpose.msra.mxu0 0.0
    %1388 = vmatprep.subr.mxu0 0.0
    %1389 = vmatpush2.xpose.msra.mxu0 0.0
    %1390 = vmatprep.mubr.f32.mxu0 0.0
    %1391 = vmatmul.mubr.f32.gmra.mxu0 %v1322
    %v1392 = vpop.f32.mrf.mxu0
    %v1393 = vadd.f32 0.0, %v1392
    %v1394 = vpop.f32.mrf.mxu0
    %1395 = vdwg.mxu0
    %v1396 = vsel %vm289, %v1393, -inf
    %1397 = vmax.xlane.f32.xlu0 %v1396
    %v1398 = vpop.xlane.xlu0 %1397
    %v1399 = vsub.f32 %v1393, %v1398
    %v1400 = vmul.f32 %v1399, 1.442695
    %v1401 = vpow.pop %v1400
    %v1402 = vsel %vm289, %v1401, 0.0
    %1403 = vadd.xlane.f32.xlu0 %v1402
    %v1404 = vpop.xlane.xlu0 %1403
    %v1405 = vrcp.pop %v1404
    %v1406 = vmul.f32 %v1401, %v1405
    %1407 = vrot.lane.b32.xlu0 %v1070, 88
    %v1408 = vpop.permute.xlu0 %1407
    %v1411 = vsel %vm289, %v1406, 0
    %1413 = vmatprep.subr.mxu0 0.0
    %1414 = vmatpush1.msra.mxu0 0.0
    %1415 = vmatprep.subr.mxu0 0.0
    %1416 = vmatpush1.msra.mxu0 0.0
    %1417 = vmatprep.subr.mxu0 0.0
    %1418 = vmatpush1.msra.mxu0 0.0
    %1419 = vmatprep.subr.mxu0 0.0
    %1420 = vmatpush1.msra.mxu0 0.0
    %1421 = vmatprep.subr.mxu0 0.0
    %1422 = vmatpush1.msra.mxu0 0.0
    %1423 = vmatprep.subr.mxu0 0.0
    %1424 = vmatpush1.msra.mxu0 0.0
    %1425 = vmatprep.subr.mxu0 0.0
    %1426 = vmatpush1.msra.mxu0 0.0
    %1427 = vmatprep.subr.mxu0 0.0
    %1428 = vmatpush1.msra.mxu0 0.0
    %1429 = vmatprep.subr.mxu0 0.0
    %1430 = vmatpush1.msra.mxu0 0.0
    %1431 = vmatprep.subr.mxu0 0.0
    %1432 = vmatpush1.msra.mxu0 0.0
    %1433 = vmatprep.subr.mxu0 0.0
    %1434 = vmatpush1.msra.mxu0 0.0
    %1435 = vmatprep.subr.mxu0 0.0
    %1436 = vmatpush1.msra.mxu0 0.0
    %1437 = vmatprep.subr.mxu0 0.0
    %1438 = vmatpush1.msra.mxu0 0.0
    %1439 = vmatprep.subr.mxu0 0.0
    %1440 = vmatpush1.msra.mxu0 0.0
    %1441 = vmatprep.subr.mxu0 0.0
    %1442 = vmatpush1.msra.mxu0 0.0
    %1443 = vmatprep.subr.mxu0 0.0
    %1444 = vmatpush1.msra.mxu0 %v1408
    %1445 = vmatprep.subr.mxu0 0.0
    %1446 = vmatpush2.msra.mxu0 0.0
    %1447 = vmatprep.subr.mxu0 0.0
    %1448 = vmatpush2.msra.mxu0 0.0
    %1449 = vmatprep.subr.mxu0 0.0
    %1450 = vmatpush2.msra.mxu0 0.0
    %1451 = vmatprep.subr.mxu0 0.0
    %1452 = vmatpush2.msra.mxu0 0.0
    %1453 = vmatprep.subr.mxu0 0.0
    %1454 = vmatpush2.msra.mxu0 0.0
    %1455 = vmatprep.subr.mxu0 0.0
    %1456 = vmatpush2.msra.mxu0 0.0
    %1457 = vmatprep.subr.mxu0 0.0
    %1458 = vmatpush2.msra.mxu0 0.0
    %1459 = vmatprep.subr.mxu0 0.0
    %1460 = vmatpush2.msra.mxu0 0.0
    %1461 = vmatprep.subr.mxu0 0.0
    %1462 = vmatpush2.msra.mxu0 0.0
    %1463 = vmatprep.subr.mxu0 0.0
    %1464 = vmatpush2.msra.mxu0 0.0
    %1465 = vmatprep.subr.mxu0 0.0
    %1466 = vmatpush2.msra.mxu0 0.0
    %1467 = vmatprep.subr.mxu0 0.0
    %1468 = vmatpush2.msra.mxu0 0.0
    %1469 = vmatprep.subr.mxu0 0.0
    %1470 = vmatpush2.msra.mxu0 0.0
    %1471 = vmatprep.subr.mxu0 0.0
    %1472 = vmatpush2.msra.mxu0 0.0
    %1473 = vmatprep.subr.mxu0 0.0
    %1474 = vmatpush2.msra.mxu0 0.0
    %1475 = vmatprep.subr.mxu0 0.0
    %1476 = vmatpush2.msra.mxu0 0.0
    %1477 = vmatprep.mubr.f32.mxu0 0.0
    %1478 = vmatmul.mubr.f32.gmra.mxu0 %v1411
    %v1479 = vpop.f32.mrf.mxu0
    %v1480 = vadd.f32 0.0, %v1479
    %v1481 = vpop.f32.mrf.mxu0
    %1482 = vdwg.mxu0
    %v1483 = vld [vmem:[#allocation2 + $0x88] sm:$0xff]
    %v1485 = vsel %vm289, %v1480, 0
    %1487 = vmatprep.subr.mxu0 0.0
    %1488 = vmatpush1.msra.mxu0 0.0
    %1489 = vmatprep.subr.mxu0 0.0
    %1490 = vmatpush1.msra.mxu0 0.0
    %1491 = vmatprep.subr.mxu0 0.0
    %1492 = vmatpush1.msra.mxu0 0.0
    %1493 = vmatprep.subr.mxu0 0.0
    %1494 = vmatpush1.msra.mxu0 0.0
    %1495 = vmatprep.subr.mxu0 0.0
    %1496 = vmatpush1.msra.mxu0 0.0
    %1497 = vmatprep.subr.mxu0 0.0
    %1498 = vmatpush1.msra.mxu0 0.0
    %1499 = vmatprep.subr.mxu0 0.0
    %1500 = vmatpush1.msra.mxu0 0.0
    %1501 = vmatprep.subr.mxu0 0.0
    %1502 = vmatpush1.msra.mxu0 0.0
    %1503 = vmatprep.subr.mxu0 0.0
    %1504 = vmatpush1.msra.mxu0 0.0
    %1505 = vmatprep.subr.mxu0 0.0
    %1506 = vmatpush1.msra.mxu0 0.0
    %1507 = vmatprep.subr.mxu0 0.0
    %1508 = vmatpush1.msra.mxu0 0.0
    %1509 = vmatprep.subr.mxu0 0.0
    %1510 = vmatpush1.msra.mxu0 0.0
    %1511 = vmatprep.subr.mxu0 0.0
    %1512 = vmatpush1.msra.mxu0 0.0
    %1513 = vmatprep.subr.mxu0 0.0
    %1514 = vmatpush1.msra.mxu0 0.0
    %1515 = vmatprep.subr.mxu0 0.0
    %1516 = vmatpush1.msra.mxu0 0.0
    %1517 = vmatprep.subr.mxu0 0.0
    %1518 = vmatpush1.msra.mxu0 %v1483
    %1519 = vmatprep.subr.mxu0 0.0
    %1520 = vmatpush2.msra.mxu0 0.0
    %1521 = vmatprep.subr.mxu0 0.0
    %1522 = vmatpush2.msra.mxu0 0.0
    %1523 = vmatprep.subr.mxu0 0.0
    %1524 = vmatpush2.msra.mxu0 0.0
    %1525 = vmatprep.subr.mxu0 0.0
    %1526 = vmatpush2.msra.mxu0 0.0
    %1527 = vmatprep.subr.mxu0 0.0
    %1528 = vmatpush2.msra.mxu0 0.0
    %1529 = vmatprep.subr.mxu0 0.0
    %1530 = vmatpush2.msra.mxu0 0.0
    %1531 = vmatprep.subr.mxu0 0.0
    %1532 = vmatpush2.msra.mxu0 0.0
    %1533 = vmatprep.subr.mxu0 0.0
    %1534 = vmatpush2.msra.mxu0 0.0
    %1535 = vmatprep.subr.mxu0 0.0
    %1536 = vmatpush2.msra.mxu0 0.0
    %1537 = vmatprep.subr.mxu0 0.0
    %1538 = vmatpush2.msra.mxu0 0.0
    %1539 = vmatprep.subr.mxu0 0.0
    %1540 = vmatpush2.msra.mxu0 0.0
    %1541 = vmatprep.subr.mxu0 0.0
    %1542 = vmatpush2.msra.mxu0 0.0
    %1543 = vmatprep.subr.mxu0 0.0
    %1544 = vmatpush2.msra.mxu0 0.0
    %1545 = vmatprep.subr.mxu0 0.0
    %1546 = vmatpush2.msra.mxu0 0.0
    %1547 = vmatprep.subr.mxu0 0.0
    %1548 = vmatpush2.msra.mxu0 0.0
    %1549 = vmatprep.subr.mxu0 0.0
    %1550 = vmatpush2.msra.mxu0 0.0
    %1551 = vmatprep.mubr.f32.mxu0 0.0
    %1552 = vmatmul.mubr.f32.gmra.mxu0 %v1485
    %v1553 = vpop.f32.mrf.mxu0
    %v1554 = vadd.f32 0.0, %v1553
    %v1555 = vpop.f32.mrf.mxu0
    %1556 = vdwg.mxu0
    %v1557 = vadd.f32 %v1317, %v1554
    %v1558 = vadd.f32 %v979, %v1557
    %v1559 = vsel %vm211, %v1558, 0.0
    %1560 = vadd.xlane.f32.xlu0 %v1559
    %v1561 = vpop.xlane.xlu0 %1560
    %v1562 = vmul.f32 %v1561, %v775
    %v1563 = vmul.f32 %v1558, %v1558
    %v1564 = vsel %vm211, %v1563, 0.0
    %1565 = vadd.xlane.f32.xlu0 %v1564
    %v1566 = vpop.xlane.xlu0 %1565
    %v1567 = vmul.f32 %v1566, %v775
    %v1568 = vmul.f32 %v1562, %v1562
    %v1569 = vsub.f32 %v1567, %v1568
    %v1570 = vsub.f32 %v1558, %v1562
    %v1571 = vadd.f32 %v1569, 1e-05
    %v1572 = vrsqrt.pop %v1571
    %v1573 = vmul.f32 %v1570, %v1572
    %v1574 = vlaneseq
    %v1575 = vshrl.u32 %v1574, 7
    %v1576 = vsub.s32 0, %v1575
    %v1577 = vrot.slane %v990, %v1576
    %v1578 = vmul.f32 %v1573, %v1577
    %v1579 = vlaneseq
    %v1580 = vshrl.u32 %v1579, 7
    %v1581 = vsub.s32 0, %v1580
    %v1582 = vrot.slane %v991, %v1581
    %v1583 = vadd.f32 %v1578, %v1582
    %v1584 = vlaneseq
    %v1585 = vshrl.u32 %v1584, 7
    %v1586 = vsub.s32 0, %v1585
    %v1587 = vrot.slane %v992, %v1586
    %v1589 = vsel %vm211, %v1583, 0
    %1591 = vmatprep.subr.mxu0 0.0
    %1592 = vmatpush1.msra.mxu0 0.0
    %1593 = vmatprep.subr.mxu0 0.0
    %1594 = vmatpush1.msra.mxu0 0.0
    %1595 = vmatprep.subr.mxu0 0.0
    %1596 = vmatpush1.msra.mxu0 0.0
    %1597 = vmatprep.subr.mxu0 0.0
    %1598 = vmatpush1.msra.mxu0 0.0
    %1599 = vmatprep.subr.mxu0 0.0
    %1600 = vmatpush1.msra.mxu0 0.0
    %1601 = vmatprep.subr.mxu0 0.0
    %1602 = vmatpush1.msra.mxu0 0.0
    %1603 = vmatprep.subr.mxu0 0.0
    %1604 = vmatpush1.msra.mxu0 0.0
    %1605 = vmatprep.subr.mxu0 0.0
    %1606 = vmatpush1.msra.mxu0 0.0
    %1607 = vmatprep.subr.mxu0 0.0
    %1608 = vmatpush1.msra.mxu0 0.0
    %1609 = vmatprep.subr.mxu0 0.0
    %1610 = vmatpush1.msra.mxu0 0.0
    %1611 = vmatprep.subr.mxu0 0.0
    %1612 = vmatpush1.msra.mxu0 0.0
    %1613 = vmatprep.subr.mxu0 0.0
    %1614 = vmatpush1.msra.mxu0 0.0
    %1615 = vmatprep.subr.mxu0 0.0
    %1616 = vmatpush1.msra.mxu0 0.0
    %1617 = vmatprep.subr.mxu0 0.0
    %1618 = vmatpush1.msra.mxu0 0.0
    %1619 = vmatprep.subr.mxu0 0.0
    %1620 = vmatpush1.msra.mxu0 %v983
    %1621 = vmatprep.subr.mxu0 0.0
    %1622 = vmatpush1.msra.mxu0 %v982
    %1623 = vmatprep.subr.mxu0 0.0
    %1624 = vmatpush2.msra.mxu0 0.0
    %1625 = vmatprep.subr.mxu0 0.0
    %1626 = vmatpush2.msra.mxu0 0.0
    %1627 = vmatprep.subr.mxu0 0.0
    %1628 = vmatpush2.msra.mxu0 0.0
    %1629 = vmatprep.subr.mxu0 0.0
    %1630 = vmatpush2.msra.mxu0 0.0
    %1631 = vmatprep.subr.mxu0 0.0
    %1632 = vmatpush2.msra.mxu0 0.0
    %1633 = vmatprep.subr.mxu0 0.0
    %1634 = vmatpush2.msra.mxu0 0.0
    %1635 = vmatprep.subr.mxu0 0.0
    %1636 = vmatpush2.msra.mxu0 0.0
    %1637 = vmatprep.subr.mxu0 0.0
    %1638 = vmatpush2.msra.mxu0 0.0
    %1639 = vmatprep.subr.mxu0 0.0
    %1640 = vmatpush2.msra.mxu0 0.0
    %1641 = vmatprep.subr.mxu0 0.0
    %1642 = vmatpush2.msra.mxu0 0.0
    %1643 = vmatprep.subr.mxu0 0.0
    %1644 = vmatpush2.msra.mxu0 0.0
    %1645 = vmatprep.subr.mxu0 0.0
    %1646 = vmatpush2.msra.mxu0 0.0
    %1647 = vmatprep.subr.mxu0 0.0
    %1648 = vmatpush2.msra.mxu0 0.0
    %1649 = vmatprep.subr.mxu0 0.0
    %1650 = vmatpush2.msra.mxu0 0.0
    %1651 = vmatprep.subr.mxu0 0.0
    %1652 = vmatpush2.msra.mxu0 0.0
    %1653 = vmatprep.subr.mxu0 0.0
    %1654 = vmatpush2.msra.mxu0 0.0
    %1655 = vmatprep.mubr.f32.mxu0 0.0
    %1656 = vmatmul.mubr.f32.gmra.mxu0 %v1589
    %v1657 = vpop.f32.mrf.mxu0
    %v1658 = vadd.f32 %v1587, %v1657
    %v1659 = vpop.f32.mrf.mxu0
    %1660 = vdwg.mxu0
    %v1661 = vmax.f32 %v1658, 0.0
    %v1662 = vlaneseq
    %v1663 = vshrl.u32 %v1662, 7
    %v1664 = vsub.s32 0, %v1663
    %v1665 = vrot.slane %v993, %v1664
    %v1667 = vsel %vm880, %v1661, 0
    %1669 = vmatprep.subr.mxu0 0.0
    %1670 = vmatpush1.msra.mxu0 0.0
    %1671 = vmatprep.subr.mxu0 0.0
    %1672 = vmatpush1.msra.mxu0 0.0
    %1673 = vmatprep.subr.mxu0 0.0
    %1674 = vmatpush1.msra.mxu0 0.0
    %1675 = vmatprep.subr.mxu0 0.0
    %1676 = vmatpush1.msra.mxu0 0.0
    %1677 = vmatprep.subr.mxu0 0.0
    %1678 = vmatpush1.msra.mxu0 0.0
    %1679 = vmatprep.subr.mxu0 0.0
    %1680 = vmatpush1.msra.mxu0 0.0
    %1681 = vmatprep.subr.mxu0 0.0
    %1682 = vmatpush1.msra.mxu0 0.0
    %1683 = vmatprep.subr.mxu0 0.0
    %1684 = vmatpush1.msra.mxu0 0.0
    %1685 = vmatprep.subr.mxu0 0.0
    %1686 = vmatpush1.msra.mxu0 0.0
    %1687 = vmatprep.subr.mxu0 0.0
    %1688 = vmatpush1.msra.mxu0 0.0
    %1689 = vmatprep.subr.mxu0 0.0
    %1690 = vmatpush1.msra.mxu0 0.0
    %1691 = vmatprep.subr.mxu0 0.0
    %1692 = vmatpush1.msra.mxu0 0.0
    %1693 = vmatprep.subr.mxu0 0.0
    %1694 = vmatpush1.msra.mxu0 %v987
    %1695 = vmatprep.subr.mxu0 0.0
    %1696 = vmatpush1.msra.mxu0 %v986
    %1697 = vmatprep.subr.mxu0 0.0
    %1698 = vmatpush1.msra.mxu0 %v985
    %1699 = vmatprep.subr.mxu0 0.0
    %1700 = vmatpush1.msra.mxu0 %v984
    %1701 = vmatprep.subr.mxu0 0.0
    %1702 = vmatpush2.msra.mxu0 0.0
    %1703 = vmatprep.subr.mxu0 0.0
    %1704 = vmatpush2.msra.mxu0 0.0
    %1705 = vmatprep.subr.mxu0 0.0
    %1706 = vmatpush2.msra.mxu0 0.0
    %1707 = vmatprep.subr.mxu0 0.0
    %1708 = vmatpush2.msra.mxu0 0.0
    %1709 = vmatprep.subr.mxu0 0.0
    %1710 = vmatpush2.msra.mxu0 0.0
    %1711 = vmatprep.subr.mxu0 0.0
    %1712 = vmatpush2.msra.mxu0 0.0
    %1713 = vmatprep.subr.mxu0 0.0
    %1714 = vmatpush2.msra.mxu0 0.0
    %1715 = vmatprep.subr.mxu0 0.0
    %1716 = vmatpush2.msra.mxu0 0.0
    %1717 = vmatprep.subr.mxu0 0.0
    %1718 = vmatpush2.msra.mxu0 0.0
    %1719 = vmatprep.subr.mxu0 0.0
    %1720 = vmatpush2.msra.mxu0 0.0
    %1721 = vmatprep.subr.mxu0 0.0
    %1722 = vmatpush2.msra.mxu0 0.0
    %1723 = vmatprep.subr.mxu0 0.0
    %1724 = vmatpush2.msra.mxu0 0.0
    %1725 = vmatprep.subr.mxu0 0.0
    %1726 = vmatpush2.msra.mxu0 0.0
    %1727 = vmatprep.subr.mxu0 0.0
    %1728 = vmatpush2.msra.mxu0 0.0
    %1729 = vmatprep.subr.mxu0 0.0
    %1730 = vmatpush2.msra.mxu0 0.0
    %1731 = vmatprep.subr.mxu0 0.0
    %1732 = vmatpush2.msra.mxu0 0.0
    %1733 = vmatprep.mubr.f32.mxu0 0.0
    %1734 = vmatmul.mubr.f32.gmra.mxu0 %v1667
    %v1735 = vpop.f32.mrf.mxu0
    %v1736 = vadd.f32 %v1665, %v1735
    %v1737 = vpop.f32.mrf.mxu0
    %1738 = vdwg.mxu0
    %v1739 = vadd.f32 %v1583, %v1736
    %v1740 = vsel %vm211, %v1739, 0.0
    %1741 = vadd.xlane.f32.xlu0 %v1740
    %v1742 = vpop.xlane.xlu0 %1741
    %v1743 = vmul.f32 %v1742, %v775
    %v1744 = vmul.f32 %v1739, %v1739
    %v1745 = vsel %vm211, %v1744, 0.0
    %1746 = vadd.xlane.f32.xlu0 %v1745
    %v1747 = vpop.xlane.xlu0 %1746
    %v1748 = vmul.f32 %v1747, %v775
    %v1749 = vmul.f32 %v1743, %v1743
    %v1750 = vsub.f32 %v1748, %v1749
    %v1751 = vsub.f32 %v1739, %v1743
    %v1752 = vadd.f32 %v1750, 1e-05
    %v1753 = vrsqrt.pop %v1752
    %v1754 = vmul.f32 %v1751, %v1753
    %v1755 = vlaneseq
    %v1756 = vshrl.u32 %v1755, 7
    %v1757 = vsub.s32 0, %v1756
    %v1758 = vrot.slane %v994, %v1757
    %v1759 = vmul.f32 %v1754, %v1758
    %v1760 = vlaneseq
    %v1761 = vshrl.u32 %v1760, 7
    %v1762 = vsub.s32 0, %v1761
    %v1763 = vrot.slane %v995, %v1762
    %v1764 = vadd.f32 %v1759, %v1763
    %v1765 = vld [vmem:[#allocation2 + $0xc8] sm:$0xff]
    %v1766 = vld [vmem:[#allocation2 + $0xd0] sm:$0xff]
    %v1767 = vld [vmem:[#allocation2 + $0xd8] sm:$0x1]
    %v1768 = vlaneseq
    %v1769 = vshrl.u32 %v1768, 7
    %v1770 = vsub.s32 0, %v1769
    %v1771 = vrot.slane %v1767, %v1770
    %v1773 = vsel %vm211, %v1764, 0
    %1775 = vmatprep.subr.mxu0 0.0
    %1776 = vmatpush1.msra.mxu0 0.0
    %1777 = vmatprep.subr.mxu0 0.0
    %1778 = vmatpush1.msra.mxu0 0.0
    %1779 = vmatprep.subr.mxu0 0.0
    %1780 = vmatpush1.msra.mxu0 0.0
    %1781 = vmatprep.subr.mxu0 0.0
    %1782 = vmatpush1.msra.mxu0 0.0
    %1783 = vmatprep.subr.mxu0 0.0
    %1784 = vmatpush1.msra.mxu0 0.0
    %1785 = vmatprep.subr.mxu0 0.0
    %1786 = vmatpush1.msra.mxu0 0.0
    %1787 = vmatprep.subr.mxu0 0.0
    %1788 = vmatpush1.msra.mxu0 0.0
    %1789 = vmatprep.subr.mxu0 0.0
    %1790 = vmatpush1.msra.mxu0 0.0
    %1791 = vmatprep.subr.mxu0 0.0
    %1792 = vmatpush1.msra.mxu0 0.0
    %1793 = vmatprep.subr.mxu0 0.0
    %1794 = vmatpush1.msra.mxu0 0.0
    %1795 = vmatprep.subr.mxu0 0.0
    %1796 = vmatpush1.msra.mxu0 0.0
    %1797 = vmatprep.subr.mxu0 0.0
    %1798 = vmatpush1.msra.mxu0 0.0
    %1799 = vmatprep.subr.mxu0 0.0
    %1800 = vmatpush1.msra.mxu0 0.0
    %1801 = vmatprep.subr.mxu0 0.0
    %1802 = vmatpush1.msra.mxu0 0.0
    %1803 = vmatprep.subr.mxu0 0.0
    %1804 = vmatpush1.msra.mxu0 %v1766
    %1805 = vmatprep.subr.mxu0 0.0
    %1806 = vmatpush1.msra.mxu0 %v1765
    %1807 = vmatprep.subr.mxu0 0.0
    %1808 = vmatpush2.msra.mxu0 0.0
    %1809 = vmatprep.subr.mxu0 0.0
    %1810 = vmatpush2.msra.mxu0 0.0
    %1811 = vmatprep.subr.mxu0 0.0
    %1812 = vmatpush2.msra.mxu0 0.0
    %1813 = vmatprep.subr.mxu0 0.0
    %1814 = vmatpush2.msra.mxu0 0.0
    %1815 = vmatprep.subr.mxu0 0.0
    %1816 = vmatpush2.msra.mxu0 0.0
    %1817 = vmatprep.subr.mxu0 0.0
    %1818 = vmatpush2.msra.mxu0 0.0
    %1819 = vmatprep.subr.mxu0 0.0
    %1820 = vmatpush2.msra.mxu0 0.0
    %1821 = vmatprep.subr.mxu0 0.0
    %1822 = vmatpush2.msra.mxu0 0.0
    %1823 = vmatprep.subr.mxu0 0.0
    %1824 = vmatpush2.msra.mxu0 0.0
    %1825 = vmatprep.subr.mxu0 0.0
    %1826 = vmatpush2.msra.mxu0 0.0
    %1827 = vmatprep.subr.mxu0 0.0
    %1828 = vmatpush2.msra.mxu0 0.0
    %1829 = vmatprep.subr.mxu0 0.0
    %1830 = vmatpush2.msra.mxu0 0.0
    %1831 = vmatprep.subr.mxu0 0.0
    %1832 = vmatpush2.msra.mxu0 0.0
    %1833 = vmatprep.subr.mxu0 0.0
    %1834 = vmatpush2.msra.mxu0 0.0
    %1835 = vmatprep.subr.mxu0 0.0
    %1836 = vmatpush2.msra.mxu0 0.0
    %1837 = vmatprep.subr.mxu0 0.0
    %1838 = vmatpush2.msra.mxu0 0.0
    %1839 = vmatprep.mubr.f32.mxu0 0.0
    %1840 = vmatmul.mubr.f32.gmra.mxu0 %v1773
    %v1841 = vpop.f32.mrf.mxu0
    %v1842 = vadd.f32 %v1771, %v1841
    %v1843 = vpop.f32.mrf.mxu0
    %1844 = vdwg.mxu0
    %vm1845 = vcmp.gt.f32.partialorder %v1842, 0.4054651
    %v1846 = vsel %vm1845, 1, 0
    %v1847 = vcvt.s32.f32 %v1846
    %1848 = vst [vmem:[#allocation5] sm:$0xff] %v1847
    // Predicated region
    $region18: #{generator_sigmoid_forward.1} parent=1 // pred_check
      _
    $region19: #{generator_sigmoid_forward.1} parent=1 // pred_check_branch
      %1850 = sbr.rel (0) target = $region21
    $region20: #{generator_sigmoid_forward.1} parent=1 // pred_region
      %s1852 = ssub.s32 128, 128
      %1853 = vsyncadd [#allocation4], %s1852
      %s1855 = sshll.u32 [#allocation5], 4
      %s1856 = int_to_ptr.vmem [resolvable:$true] %s1855
      %1858 = dma.vmem_to_hbm [thread:$0]  %s1856, 128, %s3, [#allocation4]
    $region21: #{generator_sigmoid_forward.1} parent=1 // pred_fallthru
      _
    // Predicated region
    $region22: #{generator_sigmoid_forward.1} parent=1 // pred_check
      _
    $region23: #{generator_sigmoid_forward.1} parent=1 // pred_check_branch
      %1860 = sbr.rel (0) target = $region25
    $region24: #{generator_sigmoid_forward.1} parent=1 // pred_region
      %1861 = dma.done [#allocation4], 128
    $region25: #{generator_sigmoid_forward.1} parent=1 // pred_fallthru
      _
    %1862 = vsyncpa [#allocation3], 1
    %1863 = vsyncpa [#allocation4], 1

</llo_original>
